<compile_context>
chip_gen: v7x
topology: tpu7x:2x2x1
jax: 0.10.0
libtpu: 0.0.40
codegen_flags: <defaults>
</compile_context>

<pallas_src>
import numpy as np
import jax
import jax.numpy as jnp
from jax import lax
from jax.experimental import pallas as pl
from jax.experimental.pallas import tpu as pltpu

LATENT = 8            # latent_dims
FEAT = 28             # feature_size[0]
POOL = FEAT // 2      # 14 (after MaxPool2d(2))
K = 5                 # kernel_size
PAD = 2               # conv padding
GRP = 256             # lane-aligned padded size of each pool-quadrant group
B = 2                 # batch


def encoder_kernel(x_ref, m_ref, bias_ref, w2_ref, o_ref):
    # Conv2d(1,1,5,s=1,p=2) as one MXU matmul: (B,784) @ (784,1024).
    c = jnp.dot(x_ref[...], m_ref[...], preferred_element_type=jnp.float32)
    # MaxPool2d(2): columns are grouped by pool quadrant, so the pool is an
    # elementwise max over four lane-aligned 256-wide static slices.
    pooled = jnp.maximum(jnp.maximum(c[:, 0:GRP], c[:, GRP:2 * GRP]),
                         jnp.maximum(c[:, 2 * GRP:3 * GRP], c[:, 3 * GRP:4 * GRP]))
    # Conv bias (identical across quadrants -> commutes with max) + constant-1
    # marker for the Linear bias, then ReLU (monotone -> commutes with max).
    pooled = jnp.maximum(pooled + bias_ref[...], 0.0)
    # Linear(196, latent); Linear bias folded into marker row of w2, so this
    # matmul finishes the whole forward pass.
    o_ref[...] = jnp.dot(pooled, w2_ref[...], preferred_element_type=jnp.float32)


def fold_params(w_conv, b_conv, w_lin, b_lin):
    """One-time parameter folding (NOT in the per-call path).

    Builds:
      m         (784, 1024): conv-as-matmul operator, columns ordered as
                             quadrant*256 + pool_position (lane-aligned groups).
      bias_row  (1, 256)   : conv bias on the 196 real pooled columns, 1.0 in
                             the marker column (255), 0 elsewhere.
      w2        (256, 8)   : Linear weight (transposed) padded to 256 rows,
                             with the Linear bias in the marker row (255).
    """
    w = np.asarray(w_conv, np.float32)[0, 0]                          # (5, 5)
    hh, ww = np.meshgrid(np.arange(FEAT), np.arange(FEAT), indexing="ij")
    quad = (hh % 2) * 2 + (ww % 2)                                    # pool quadrant
    ppos = (hh // 2) * POOL + (ww // 2)                               # pool position
    cols = quad * GRP + ppos                                          # output column
    m = np.zeros((FEAT * FEAT, 4 * GRP), np.float32)
    for kh in range(K):                                               # 25 iters, one-time
        for kw in range(K):
            hin = hh - PAD + kh
            win = ww - PAD + kw
            valid = (hin >= 0) & (hin < FEAT) & (win >= 0) & (win < FEAT)
            m[(hin * FEAT + win)[valid], cols[valid]] = w[kh, kw]

    bias_row = np.zeros((1, GRP), np.float32)
    bias_row[0, :POOL * POOL] = float(np.asarray(b_conv)[0])
    bias_row[0, GRP - 1] = 1.0            # constant-1 marker -> Linear bias

    w2 = np.zeros((GRP, LATENT), np.float32)
    w2[:POOL * POOL, :] = np.asarray(w_lin, np.float32).T             # (196, latent)
    w2[GRP - 1, :] = np.asarray(b_lin, np.float32)
    return jnp.asarray(m), jnp.asarray(bias_row), jnp.asarray(w2)


@jax.jit
def cnn_encoder_forward(x, m, bias_row, w2):
    x_flat = x.reshape(x.shape[0], FEAT * FEAT)       # (B, 784), layout-only reshape
    return pl.pallas_call(
        encoder_kernel,
        out_shape=jax.ShapeDtypeStruct((x_flat.shape[0], LATENT), jnp.float32),
        in_specs=[pl.BlockSpec(memory_space=pltpu.MemorySpace.VMEM)] * 4,
        out_specs=pl.BlockSpec(memory_space=pltpu.MemorySpace.VMEM),
    )(x_flat, m, bias_row, w2)


def reference_forward(x, w_conv, b_conv, w_lin, b_lin):
    """Pure-JAX reference of the PyTorch CNNEncoder semantics."""
    y = lax.conv_general_dilated(x, w_conv, window_strides=(1, 1),
                                 padding=((PAD, PAD), (PAD, PAD)),
                                 dimension_numbers=("NCHW", "OIHW", "NCHW"))
    y = jnp.maximum(y + b_conv.reshape(1, 1, 1, 1), 0.0)               # ReLU
    y = y.reshape(x.shape[0], 1, POOL, 2, POOL, 2).max(axis=(3, 5))    # MaxPool2d(2)
    return y.reshape(x.shape[0], -1) @ w_lin.T + b_lin                 # Linear


if __name__ == "__main__":
    key = jax.random.PRNGKey(0)
    k0, k1, k2, k3, k4 = jax.random.split(key, 5)
    x = jax.random.normal(k0, (B, 1, FEAT, FEAT), jnp.float32)
    # nn.Conv2d(1, 1, 5): weight (1, 1, 5, 5), bias (1,)
    w_conv = 0.1 * jax.random.normal(k1, (1, 1, K, K), jnp.float32)
    b_conv = 0.1 * jax.random.normal(k2, (1,), jnp.float32)
    # nn.Linear(196, latent): weight (latent, 196), bias (latent,)
    w_lin = 0.1 * jax.random.normal(k3, (LATENT, POOL * POOL), jnp.float32)
    b_lin = 0.1 * jax.random.normal(k4, (LATENT,), jnp.float32)

    # One-time setup (hoisted out of the forward hot path).
    m, bias_row, w2 = fold_params(w_conv, b_conv, w_lin, b_lin)

    out = jax.block_until_ready(cnn_encoder_forward(x, m, bias_row, w2))
    ref = jax.block_until_ready(reference_forward(x, w_conv, b_conv, w_lin, b_lin))

    assert out.shape == (B, LATENT), out.shape
    assert np.allclose(np.asarray(out), np.asarray(ref), rtol=1e-5, atol=1e-5), \
        float(np.max(np.abs(np.asarray(out) - np.asarray(ref))))
    print("KERNEL_OK")
</pallas_src>

<mosaic_0001>
module attributes {stable_mosaic.version = 11 : i64} {
  func.func @encoder_kernel(%arg0: memref<2x784xf32, #tpu.memory_space<vmem>>, %arg1: memref<784x1024xf32, #tpu.memory_space<vmem>>, %arg2: memref<1x256xf32, #tpu.memory_space<vmem>>, %arg3: memref<256x8xf32, #tpu.memory_space<vmem>>, %arg4: memref<2x8xf32, #tpu.memory_space<vmem>>) attributes {dimension_semantics = [], scalar_prefetch = 0 : i64, scratch_operands = 0 : i64, tpu.core_type = #tpu.core_type<tc>} {
    %c0 = arith.constant 0 : index
    %c0_0 = arith.constant 0 : index
    %0 = vector.load %arg0[%c0, %c0_0] : memref<2x784xf32, #tpu.memory_space<vmem>>, vector<2x784xf32>
    %c0_1 = arith.constant 0 : index
    %c0_2 = arith.constant 0 : index
    %1 = vector.load %arg1[%c0_1, %c0_2] : memref<784x1024xf32, #tpu.memory_space<vmem>>, vector<784x1024xf32>
    %cst = arith.constant dense<0.000000e+00> : vector<2x1024xf32>
    %2 = tpu.matmul %0, %1, %cst {dimension_numbers = #tpu.dot_dimension_numbers<[1], [0], [0], [1], [0, 0, 1, 1], [], []>} : vector<2x784xf32>, vector<784x1024xf32>, vector<2x1024xf32> -> vector<2x1024xf32>
    %3 = vector.extract_strided_slice %2 {offsets = [0, 0], sizes = [2, 256], strides = [1, 1]} : vector<2x1024xf32> to vector<2x256xf32>
    %4 = vector.extract_strided_slice %2 {offsets = [0, 256], sizes = [2, 256], strides = [1, 1]} : vector<2x1024xf32> to vector<2x256xf32>
    %5 = arith.maximumf %3, %4 : vector<2x256xf32>
    %6 = vector.extract_strided_slice %2 {offsets = [0, 512], sizes = [2, 256], strides = [1, 1]} : vector<2x1024xf32> to vector<2x256xf32>
    %7 = vector.extract_strided_slice %2 {offsets = [0, 768], sizes = [2, 256], strides = [1, 1]} : vector<2x1024xf32> to vector<2x256xf32>
    %8 = arith.maximumf %6, %7 : vector<2x256xf32>
    %9 = arith.maximumf %5, %8 : vector<2x256xf32>
    %c0_3 = arith.constant 0 : index
    %c0_4 = arith.constant 0 : index
    %10 = vector.load %arg2[%c0_3, %c0_4] : memref<1x256xf32, #tpu.memory_space<vmem>>, vector<1x256xf32>
    %11 = vector.broadcast %10 : vector<1x256xf32> to vector<2x256xf32>
    %12 = arith.addf %9, %11 : vector<2x256xf32>
    %cst_5 = arith.constant 0.000000e+00 : f32
    %13 = vector.broadcast %cst_5 : f32 to vector<2x256xf32>
    %14 = arith.maximumf %12, %13 : vector<2x256xf32>
    %c0_6 = arith.constant 0 : index
    %c0_7 = arith.constant 0 : index
    %15 = vector.load %arg3[%c0_6, %c0_7] : memref<256x8xf32, #tpu.memory_space<vmem>>, vector<256x8xf32>
    %cst_8 = arith.constant dense<0.000000e+00> : vector<2x8xf32>
    %16 = tpu.matmul %14, %15, %cst_8 {dimension_numbers = #tpu.dot_dimension_numbers<[1], [0], [0], [1], [0, 0, 1, 1], [], []>} : vector<2x256xf32>, vector<256x8xf32>, vector<2x8xf32> -> vector<2x8xf32>
    %c0_9 = arith.constant 0 : index
    %c0_10 = arith.constant 0 : index
    %17 = vector.load %arg4[%c0_9, %c0_10] : memref<2x8xf32, #tpu.memory_space<vmem>>, vector<2x8xf32>
    tpu.vector_store %arg4[%c0_9, %c0_10], %16 {strides = array<i32>} : memref<2x8xf32, #tpu.memory_space<vmem>>, vector<2x8xf32>,
    return
  }
}

</mosaic_0001>

<llo_original>
// kernel: cnn_encoder_forward.1
$region0: #{cnn_encoder_forward.1}
  #allocation0 [shape = 'u32[]', space=smem, size = 0x4, offset = 0x4, fixed_abs, tag = 'smem constant byte address 0x4 - core index']
  #allocation1 [shape = 'u32[144,128]{1,0:T(1,128)}', space=vmem, size = 0x12000, scoped, tag = 'internal scratch']
  %s0 = inlined_call_operand.vmem [shape: f32[2,784], index: 0, kind: input, shape index: {}]
  %s1 = inlined_call_operand.hbm [shape: f32[784,1024], index: 1, kind: input, shape index: {}]
  %s2 = inlined_call_operand.hbm [shape: f32[1,256], index: 2, kind: input, shape index: {}]
  %s3 = inlined_call_operand.vmem [shape: f32[256,8], index: 3, kind: input, shape index: {}]
  %s4 = inlined_call_operand.hbm [shape: f32[2,8], index: 4, kind: output, shape index: {}]
  %s5 = sld [smem:[#allocation0]]
  $region34: #{cnn_encoder_forward.1} parent=0
    _
  %s7 = ssub.s32 1, %s5
  %s8 = scalar_select 0, %s7, %s5
  $region1: #{cnn_encoder_forward.1} parent=0
    #allocation2 [shape = 'u8[3211264]{0}', space=vmem, size = 0x310000, scoped, tag = 'input window, operand 1, single buffered']
    #allocation3 [shape = 's32[1]{0}', space=sflag, size = 0x4, scoped, tag = 'scoped memory for cnn_encoder_forward.1']
    #allocation4 [shape = 's32[1]{0}', space=sflag, size = 0x4, scoped, tag = 'scoped memory for cnn_encoder_forward.1']
    #allocation5 [shape = 'u8[1024]{0}', space=vmem, size = 0x400, scoped, tag = 'input window, operand 2, single buffered']
    #allocation6 [shape = 's32[1]{0}', space=sflag, size = 0x4, scoped, tag = 'scoped memory for cnn_encoder_forward.1']
    #allocation7 [shape = 'u8[1024]{0}', space=vmem, size = 0x400, scoped, tag = 'output window, operand 0, single buffered']
    %9 = vsyncpa [#allocation3], 0
    %10 = vsyncpa [#allocation6], 0
    %11 = vsyncpa [#allocation4], 0
    // Predicated region
    $region2: #{cnn_encoder_forward.1} parent=1 // pred_check
      _
    $region3: #{cnn_encoder_forward.1} parent=1 // pred_check_branch
      %13 = sbr.rel (0) target = $region5
    $region4: #{cnn_encoder_forward.1} parent=1 // pred_region
      _
    $region5: #{cnn_encoder_forward.1} parent=1 // pred_fallthru
      _
    // Predicated region
    $region6: #{cnn_encoder_forward.1} parent=1 // pred_check
      _
    $region7: #{cnn_encoder_forward.1} parent=1 // pred_check_branch
      %15 = sbr.rel (0) target = $region9
    $region8: #{cnn_encoder_forward.1} parent=1 // pred_region
      %s17 = ssub.s32 100352, 100352
      %18 = vsyncadd [#allocation3], %s17
      %s19 = sshll.u32 [#allocation2], 4
      %s20 = int_to_ptr.vmem [resolvable:$true] %s19
      %25 = dma.hbm_to_vmem [thread:$0]  %s1, 100352, %s20, [#allocation3], 1024, 1024, 64
    $region9: #{cnn_encoder_forward.1} parent=1 // pred_fallthru
      _
    // Predicated region
    $region10: #{cnn_encoder_forward.1} parent=1 // pred_check
      _
    $region11: #{cnn_encoder_forward.1} parent=1 // pred_check_branch
      %27 = sbr.rel (0) target = $region13
    $region12: #{cnn_encoder_forward.1} parent=1 // pred_region
      %s29 = ssub.s32 32, 32
      %30 = vsyncadd [#allocation6], %s29
      %s32 = sshll.u32 [#allocation5], 4
      %s33 = int_to_ptr.vmem [resolvable:$true] %s32
      %35 = dma.hbm_to_vmem [thread:$0]  %s2, 32, %s33, [#allocation6]
    $region13: #{cnn_encoder_forward.1} parent=1 // pred_fallthru
      _
    // Predicated region
    $region14: #{cnn_encoder_forward.1} parent=1 // pred_check
      _
    $region15: #{cnn_encoder_forward.1} parent=1 // pred_check_branch
      %37 = sbr.rel (0) target = $region17
    $region16: #{cnn_encoder_forward.1} parent=1 // pred_region
      _
    $region17: #{cnn_encoder_forward.1} parent=1 // pred_fallthru
      _
    // Predicated region
    $region18: #{cnn_encoder_forward.1} parent=1 // pred_check
      _
    $region19: #{cnn_encoder_forward.1} parent=1 // pred_check_branch
      %39 = sbr.rel (0) target = $region21
    $region20: #{cnn_encoder_forward.1} parent=1 // pred_region
      %40 = dma.done [#allocation3], 100352
    $region21: #{cnn_encoder_forward.1} parent=1 // pred_fallthru
      _
    // Predicated region
    $region22: #{cnn_encoder_forward.1} parent=1 // pred_check
      _
    $region23: #{cnn_encoder_forward.1} parent=1 // pred_check_branch
      %42 = sbr.rel (0) target = $region25
    $region24: #{cnn_encoder_forward.1} parent=1 // pred_region
      %43 = dma.done [#allocation6], 32
    $region25: #{cnn_encoder_forward.1} parent=1 // pred_fallthru
      _
    %v44 = vld [vmem:[%s0] sm:$0xff]
    %v45 = vld [vmem:[%s0 + $0x8] sm:$0x3f]
    %v46 = vld [vmem:[#allocation2] sm:$0xff]
    %v47 = vld [vmem:[#allocation2 + $0x8] sm:$0xff]
    %v48 = vld [vmem:[#allocation2 + $0x10] sm:$0xff]
    %v49 = vld [vmem:[#allocation2 + $0x18] sm:$0xff]
    %v50 = vld [vmem:[#allocation2 + $0x20] sm:$0xff]
    %v51 = vld [vmem:[#allocation2 + $0x28] sm:$0xff]
    %v52 = vld [vmem:[#allocation2 + $0x30] sm:$0xff]
    %v53 = vld [vmem:[#allocation2 + $0x38] sm:$0xff]
    %v54 = vld [vmem:[#allocation2 + $0x40] sm:$0xff]
    %v55 = vld [vmem:[#allocation2 + $0x48] sm:$0xff]
    %v56 = vld [vmem:[#allocation2 + $0x50] sm:$0xff]
    %v57 = vld [vmem:[#allocation2 + $0x58] sm:$0xff]
    %v58 = vld [vmem:[#allocation2 + $0x60] sm:$0xff]
    %v59 = vld [vmem:[#allocation2 + $0x68] sm:$0xff]
    %v60 = vld [vmem:[#allocation2 + $0x70] sm:$0xff]
    %v61 = vld [vmem:[#allocation2 + $0x78] sm:$0xff]
    %v62 = vld [vmem:[#allocation2 + $0x80] sm:$0xff]
    %v63 = vld [vmem:[#allocation2 + $0x88] sm:$0xff]
    %v64 = vld [vmem:[#allocation2 + $0x90] sm:$0xff]
    %v65 = vld [vmem:[#allocation2 + $0x98] sm:$0xff]
    %v66 = vld [vmem:[#allocation2 + $0xa0] sm:$0xff]
    %v67 = vld [vmem:[#allocation2 + $0xa8] sm:$0xff]
    %v68 = vld [vmem:[#allocation2 + $0xb0] sm:$0xff]
    %v69 = vld [vmem:[#allocation2 + $0xb8] sm:$0xff]
    %v70 = vld [vmem:[#allocation2 + $0xc0] sm:$0xff]
    %v71 = vld [vmem:[#allocation2 + $0xc8] sm:$0xff]
    %v72 = vld [vmem:[#allocation2 + $0xd0] sm:$0xff]
    %v73 = vld [vmem:[#allocation2 + $0xd8] sm:$0xff]
    %v74 = vld [vmem:[#allocation2 + $0xe0] sm:$0xff]
    %v75 = vld [vmem:[#allocation2 + $0xe8] sm:$0xff]
    %v76 = vld [vmem:[#allocation2 + $0xf0] sm:$0xff]
    %v77 = vld [vmem:[#allocation2 + $0xf8] sm:$0xff]
    %v78 = vld [vmem:[#allocation2 + $0x100] sm:$0xff]
    %v79 = vld [vmem:[#allocation2 + $0x108] sm:$0xff]
    %v80 = vld [vmem:[#allocation2 + $0x110] sm:$0xff]
    %v81 = vld [vmem:[#allocation2 + $0x118] sm:$0xff]
    %v82 = vld [vmem:[#allocation2 + $0x120] sm:$0xff]
    %v83 = vld [vmem:[#allocation2 + $0x128] sm:$0xff]
    %v84 = vld [vmem:[#allocation2 + $0x130] sm:$0xff]
    %v85 = vld [vmem:[#allocation2 + $0x138] sm:$0xff]
    %v86 = vld [vmem:[#allocation2 + $0x140] sm:$0xff]
    %v87 = vld [vmem:[#allocation2 + $0x148] sm:$0xff]
    %v88 = vld [vmem:[#allocation2 + $0x150] sm:$0xff]
    %v89 = vld [vmem:[#allocation2 + $0x158] sm:$0xff]
    %v90 = vld [vmem:[#allocation2 + $0x160] sm:$0xff]
    %v91 = vld [vmem:[#allocation2 + $0x168] sm:$0xff]
    %v92 = vld [vmem:[#allocation2 + $0x170] sm:$0xff]
    %v93 = vld [vmem:[#allocation2 + $0x178] sm:$0xff]
    %v94 = vld [vmem:[#allocation2 + $0x180] sm:$0xff]
    %v95 = vld [vmem:[#allocation2 + $0x188] sm:$0xff]
    %v96 = vld [vmem:[#allocation2 + $0x190] sm:$0xff]
    %v97 = vld [vmem:[#allocation2 + $0x198] sm:$0xff]
    %v98 = vld [vmem:[#allocation2 + $0x1a0] sm:$0xff]
    %v99 = vld [vmem:[#allocation2 + $0x1a8] sm:$0xff]
    %v100 = vld [vmem:[#allocation2 + $0x1b0] sm:$0xff]
    %v101 = vld [vmem:[#allocation2 + $0x1b8] sm:$0xff]
    %v102 = vld [vmem:[#allocation2 + $0x1c0] sm:$0xff]
    %v103 = vld [vmem:[#allocation2 + $0x1c8] sm:$0xff]
    %v104 = vld [vmem:[#allocation2 + $0x1d0] sm:$0xff]
    %v105 = vld [vmem:[#allocation2 + $0x1d8] sm:$0xff]
    %v106 = vld [vmem:[#allocation2 + $0x1e0] sm:$0xff]
    %v107 = vld [vmem:[#allocation2 + $0x1e8] sm:$0xff]
    %v108 = vld [vmem:[#allocation2 + $0x1f0] sm:$0xff]
    %v109 = vld [vmem:[#allocation2 + $0x1f8] sm:$0xff]
    %v110 = vld [vmem:[#allocation2 + $0x200] sm:$0xff]
    %v111 = vld [vmem:[#allocation2 + $0x208] sm:$0xff]
    %v112 = vld [vmem:[#allocation2 + $0x210] sm:$0xff]
    %v113 = vld [vmem:[#allocation2 + $0x218] sm:$0xff]
    %v114 = vld [vmem:[#allocation2 + $0x220] sm:$0xff]
    %v115 = vld [vmem:[#allocation2 + $0x228] sm:$0xff]
    %v116 = vld [vmem:[#allocation2 + $0x230] sm:$0xff]
    %v117 = vld [vmem:[#allocation2 + $0x238] sm:$0xff]
    %v118 = vld [vmem:[#allocation2 + $0x240] sm:$0xff]
    %v119 = vld [vmem:[#allocation2 + $0x248] sm:$0xff]
    %v120 = vld [vmem:[#allocation2 + $0x250] sm:$0xff]
    %v121 = vld [vmem:[#allocation2 + $0x258] sm:$0xff]
    %v122 = vld [vmem:[#allocation2 + $0x260] sm:$0xff]
    %v123 = vld [vmem:[#allocation2 + $0x268] sm:$0xff]
    %v124 = vld [vmem:[#allocation2 + $0x270] sm:$0xff]
    %v125 = vld [vmem:[#allocation2 + $0x278] sm:$0xff]
    %v126 = vld [vmem:[#allocation2 + $0x280] sm:$0xff]
    %v127 = vld [vmem:[#allocation2 + $0x288] sm:$0xff]
    %v128 = vld [vmem:[#allocation2 + $0x290] sm:$0xff]
    %v129 = vld [vmem:[#allocation2 + $0x298] sm:$0xff]
    %v130 = vld [vmem:[#allocation2 + $0x2a0] sm:$0xff]
    %v131 = vld [vmem:[#allocation2 + $0x2a8] sm:$0xff]
    %v132 = vld [vmem:[#allocation2 + $0x2b0] sm:$0xff]
    %v133 = vld [vmem:[#allocation2 + $0x2b8] sm:$0xff]
    %v134 = vld [vmem:[#allocation2 + $0x2c0] sm:$0xff]
    %v135 = vld [vmem:[#allocation2 + $0x2c8] sm:$0xff]
    %v136 = vld [vmem:[#allocation2 + $0x2d0] sm:$0xff]
    %v137 = vld [vmem:[#allocation2 + $0x2d8] sm:$0xff]
    %v138 = vld [vmem:[#allocation2 + $0x2e0] sm:$0xff]
    %v139 = vld [vmem:[#allocation2 + $0x2e8] sm:$0xff]
    %v140 = vld [vmem:[#allocation2 + $0x2f0] sm:$0xff]
    %v141 = vld [vmem:[#allocation2 + $0x2f8] sm:$0xff]
    %v142 = vld [vmem:[#allocation2 + $0x300] sm:$0xff]
    %v143 = vld [vmem:[#allocation2 + $0x308] sm:$0xff]
    %v144 = vld [vmem:[#allocation2 + $0x310] sm:$0xff]
    %v145 = vld [vmem:[#allocation2 + $0x318] sm:$0xff]
    %v146 = vld [vmem:[#allocation2 + $0x320] sm:$0xff]
    %v147 = vld [vmem:[#allocation2 + $0x328] sm:$0xff]
    %v148 = vld [vmem:[#allocation2 + $0x330] sm:$0xff]
    %v149 = vld [vmem:[#allocation2 + $0x338] sm:$0xff]
    %v150 = vld [vmem:[#allocation2 + $0x340] sm:$0xff]
    %v151 = vld [vmem:[#allocation2 + $0x348] sm:$0xff]
    %v152 = vld [vmem:[#allocation2 + $0x350] sm:$0xff]
    %v153 = vld [vmem:[#allocation2 + $0x358] sm:$0xff]
    %v154 = vld [vmem:[#allocation2 + $0x360] sm:$0xff]
    %v155 = vld [vmem:[#allocation2 + $0x368] sm:$0xff]
    %v156 = vld [vmem:[#allocation2 + $0x370] sm:$0xff]
    %v157 = vld [vmem:[#allocation2 + $0x378] sm:$0xff]
    %v158 = vld [vmem:[#allocation2 + $0x380] sm:$0xff]
    %v159 = vld [vmem:[#allocation2 + $0x388] sm:$0xff]
    %v160 = vld [vmem:[#allocation2 + $0x390] sm:$0xff]
    %v161 = vld [vmem:[#allocation2 + $0x398] sm:$0xff]
    %v162 = vld [vmem:[#allocation2 + $0x3a0] sm:$0xff]
    %v163 = vld [vmem:[#allocation2 + $0x3a8] sm:$0xff]
    %v164 = vld [vmem:[#allocation2 + $0x3b0] sm:$0xff]
    %v165 = vld [vmem:[#allocation2 + $0x3b8] sm:$0xff]
    %v166 = vld [vmem:[#allocation2 + $0x3c0] sm:$0xff]
    %v167 = vld [vmem:[#allocation2 + $0x3c8] sm:$0xff]
    %v168 = vld [vmem:[#allocation2 + $0x3d0] sm:$0xff]
    %v169 = vld [vmem:[#allocation2 + $0x3d8] sm:$0xff]
    %v170 = vld [vmem:[#allocation2 + $0x3e0] sm:$0xff]
    %v171 = vld [vmem:[#allocation2 + $0x3e8] sm:$0xff]
    %v172 = vld [vmem:[#allocation2 + $0x3f0] sm:$0xff]
    %v173 = vld [vmem:[#allocation2 + $0x3f8] sm:$0xff]
    %v174 = vld [vmem:[#allocation2 + $0x400] sm:$0xff]
    %v175 = vld [vmem:[#allocation2 + $0x408] sm:$0xff]
    %v176 = vld [vmem:[#allocation2 + $0x410] sm:$0xff]
    %v177 = vld [vmem:[#allocation2 + $0x418] sm:$0xff]
    %v178 = vld [vmem:[#allocation2 + $0x420] sm:$0xff]
    %v179 = vld [vmem:[#allocation2 + $0x428] sm:$0xff]
    %v180 = vld [vmem:[#allocation2 + $0x430] sm:$0xff]
    %v181 = vld [vmem:[#allocation2 + $0x438] sm:$0xff]
    %v182 = vld [vmem:[#allocation2 + $0x440] sm:$0xff]
    %v183 = vld [vmem:[#allocation2 + $0x448] sm:$0xff]
    %v184 = vld [vmem:[#allocation2 + $0x450] sm:$0xff]
    %v185 = vld [vmem:[#allocation2 + $0x458] sm:$0xff]
    %v186 = vld [vmem:[#allocation2 + $0x460] sm:$0xff]
    %v187 = vld [vmem:[#allocation2 + $0x468] sm:$0xff]
    %v188 = vld [vmem:[#allocation2 + $0x470] sm:$0xff]
    %v189 = vld [vmem:[#allocation2 + $0x478] sm:$0xff]
    %v190 = vld [vmem:[#allocation2 + $0x480] sm:$0xff]
    %v191 = vld [vmem:[#allocation2 + $0x488] sm:$0xff]
    %v192 = vld [vmem:[#allocation2 + $0x490] sm:$0xff]
    %v193 = vld [vmem:[#allocation2 + $0x498] sm:$0xff]
    %v194 = vld [vmem:[#allocation2 + $0x4a0] sm:$0xff]
    %v195 = vld [vmem:[#allocation2 + $0x4a8] sm:$0xff]
    %v196 = vld [vmem:[#allocation2 + $0x4b0] sm:$0xff]
    %v197 = vld [vmem:[#allocation2 + $0x4b8] sm:$0xff]
    %v198 = vld [vmem:[#allocation2 + $0x4c0] sm:$0xff]
    %v199 = vld [vmem:[#allocation2 + $0x4c8] sm:$0xff]
    %v200 = vld [vmem:[#allocation2 + $0x4d0] sm:$0xff]
    %v201 = vld [vmem:[#allocation2 + $0x4d8] sm:$0xff]
    %v202 = vld [vmem:[#allocation2 + $0x4e0] sm:$0xff]
    %v203 = vld [vmem:[#allocation2 + $0x4e8] sm:$0xff]
    %v204 = vld [vmem:[#allocation2 + $0x4f0] sm:$0xff]
    %v205 = vld [vmem:[#allocation2 + $0x4f8] sm:$0xff]
    %v206 = vld [vmem:[#allocation2 + $0x500] sm:$0xff]
    %v207 = vld [vmem:[#allocation2 + $0x508] sm:$0xff]
    %v208 = vld [vmem:[#allocation2 + $0x510] sm:$0xff]
    %v209 = vld [vmem:[#allocation2 + $0x518] sm:$0xff]
    %v210 = vld [vmem:[#allocation2 + $0x520] sm:$0xff]
    %v211 = vld [vmem:[#allocation2 + $0x528] sm:$0xff]
    %v212 = vld [vmem:[#allocation2 + $0x530] sm:$0xff]
    %v213 = vld [vmem:[#allocation2 + $0x538] sm:$0xff]
    %v214 = vld [vmem:[#allocation2 + $0x540] sm:$0xff]
    %v215 = vld [vmem:[#allocation2 + $0x548] sm:$0xff]
    %v216 = vld [vmem:[#allocation2 + $0x550] sm:$0xff]
    %v217 = vld [vmem:[#allocation2 + $0x558] sm:$0xff]
    %v218 = vld [vmem:[#allocation2 + $0x560] sm:$0xff]
    %v219 = vld [vmem:[#allocation2 + $0x568] sm:$0xff]
    %v220 = vld [vmem:[#allocation2 + $0x570] sm:$0xff]
    %v221 = vld [vmem:[#allocation2 + $0x578] sm:$0xff]
    %v222 = vld [vmem:[#allocation2 + $0x580] sm:$0xff]
    %v223 = vld [vmem:[#allocation2 + $0x588] sm:$0xff]
    %v224 = vld [vmem:[#allocation2 + $0x590] sm:$0xff]
    %v225 = vld [vmem:[#allocation2 + $0x598] sm:$0xff]
    %v226 = vld [vmem:[#allocation2 + $0x5a0] sm:$0xff]
    %v227 = vld [vmem:[#allocation2 + $0x5a8] sm:$0xff]
    %v228 = vld [vmem:[#allocation2 + $0x5b0] sm:$0xff]
    %v229 = vld [vmem:[#allocation2 + $0x5b8] sm:$0xff]
    %v230 = vld [vmem:[#allocation2 + $0x5c0] sm:$0xff]
    %v231 = vld [vmem:[#allocation2 + $0x5c8] sm:$0xff]
    %v232 = vld [vmem:[#allocation2 + $0x5d0] sm:$0xff]
    %v233 = vld [vmem:[#allocation2 + $0x5d8] sm:$0xff]
    %v234 = vld [vmem:[#allocation2 + $0x5e0] sm:$0xff]
    %v235 = vld [vmem:[#allocation2 + $0x5e8] sm:$0xff]
    %v236 = vld [vmem:[#allocation2 + $0x5f0] sm:$0xff]
    %v237 = vld [vmem:[#allocation2 + $0x5f8] sm:$0xff]
    %v238 = vld [vmem:[#allocation2 + $0x600] sm:$0xff]
    %v239 = vld [vmem:[#allocation2 + $0x608] sm:$0xff]
    %v240 = vld [vmem:[#allocation2 + $0x610] sm:$0xff]
    %v241 = vld [vmem:[#allocation2 + $0x618] sm:$0xff]
    %v242 = vld [vmem:[#allocation2 + $0x620] sm:$0xff]
    %v243 = vld [vmem:[#allocation2 + $0x628] sm:$0xff]
    %v244 = vld [vmem:[#allocation2 + $0x630] sm:$0xff]
    %v245 = vld [vmem:[#allocation2 + $0x638] sm:$0xff]
    %v246 = vld [vmem:[#allocation2 + $0x640] sm:$0xff]
    %v247 = vld [vmem:[#allocation2 + $0x648] sm:$0xff]
    %v248 = vld [vmem:[#allocation2 + $0x650] sm:$0xff]
    %v249 = vld [vmem:[#allocation2 + $0x658] sm:$0xff]
    %v250 = vld [vmem:[#allocation2 + $0x660] sm:$0xff]
    %v251 = vld [vmem:[#allocation2 + $0x668] sm:$0xff]
    %v252 = vld [vmem:[#allocation2 + $0x670] sm:$0xff]
    %v253 = vld [vmem:[#allocation2 + $0x678] sm:$0xff]
    %v254 = vld [vmem:[#allocation2 + $0x680] sm:$0xff]
    %v255 = vld [vmem:[#allocation2 + $0x688] sm:$0xff]
    %v256 = vld [vmem:[#allocation2 + $0x690] sm:$0xff]
    %v257 = vld [vmem:[#allocation2 + $0x698] sm:$0xff]
    %v258 = vld [vmem:[#allocation2 + $0x6a0] sm:$0xff]
    %v259 = vld [vmem:[#allocation2 + $0x6a8] sm:$0xff]
    %v260 = vld [vmem:[#allocation2 + $0x6b0] sm:$0xff]
    %v261 = vld [vmem:[#allocation2 + $0x6b8] sm:$0xff]
    %v262 = vld [vmem:[#allocation2 + $0x6c0] sm:$0xff]
    %v263 = vld [vmem:[#allocation2 + $0x6c8] sm:$0xff]
    %v264 = vld [vmem:[#allocation2 + $0x6d0] sm:$0xff]
    %v265 = vld [vmem:[#allocation2 + $0x6d8] sm:$0xff]
    %v266 = vld [vmem:[#allocation2 + $0x6e0] sm:$0xff]
    %v267 = vld [vmem:[#allocation2 + $0x6e8] sm:$0xff]
    %v268 = vld [vmem:[#allocation2 + $0x6f0] sm:$0xff]
    %v269 = vld [vmem:[#allocation2 + $0x6f8] sm:$0xff]
    %v270 = vld [vmem:[#allocation2 + $0x700] sm:$0xff]
    %v271 = vld [vmem:[#allocation2 + $0x708] sm:$0xff]
    %v272 = vld [vmem:[#allocation2 + $0x710] sm:$0xff]
    %v273 = vld [vmem:[#allocation2 + $0x718] sm:$0xff]
    %v274 = vld [vmem:[#allocation2 + $0x720] sm:$0xff]
    %v275 = vld [vmem:[#allocation2 + $0x728] sm:$0xff]
    %v276 = vld [vmem:[#allocation2 + $0x730] sm:$0xff]
    %v277 = vld [vmem:[#allocation2 + $0x738] sm:$0xff]
    %v278 = vld [vmem:[#allocation2 + $0x740] sm:$0xff]
    %v279 = vld [vmem:[#allocation2 + $0x748] sm:$0xff]
    %v280 = vld [vmem:[#allocation2 + $0x750] sm:$0xff]
    %v281 = vld [vmem:[#allocation2 + $0x758] sm:$0xff]
    %v282 = vld [vmem:[#allocation2 + $0x760] sm:$0xff]
    %v283 = vld [vmem:[#allocation2 + $0x768] sm:$0xff]
    %v284 = vld [vmem:[#allocation2 + $0x770] sm:$0xff]
    %v285 = vld [vmem:[#allocation2 + $0x778] sm:$0xff]
    %v286 = vld [vmem:[#allocation2 + $0x780] sm:$0xff]
    %v287 = vld [vmem:[#allocation2 + $0x788] sm:$0xff]
    %v288 = vld [vmem:[#allocation2 + $0x790] sm:$0xff]
    %v289 = vld [vmem:[#allocation2 + $0x798] sm:$0xff]
    %v290 = vld [vmem:[#allocation2 + $0x7a0] sm:$0xff]
    %v291 = vld [vmem:[#allocation2 + $0x7a8] sm:$0xff]
    %v292 = vld [vmem:[#allocation2 + $0x7b0] sm:$0xff]
    %v293 = vld [vmem:[#allocation2 + $0x7b8] sm:$0xff]
    %v294 = vld [vmem:[#allocation2 + $0x7c0] sm:$0xff]
    %v295 = vld [vmem:[#allocation2 + $0x7c8] sm:$0xff]
    %v296 = vld [vmem:[#allocation2 + $0x7d0] sm:$0xff]
    %v297 = vld [vmem:[#allocation2 + $0x7d8] sm:$0xff]
    %v298 = vld [vmem:[#allocation2 + $0x7e0] sm:$0xff]
    %v299 = vld [vmem:[#allocation2 + $0x7e8] sm:$0xff]
    %v300 = vld [vmem:[#allocation2 + $0x7f0] sm:$0xff]
    %v301 = vld [vmem:[#allocation2 + $0x7f8] sm:$0xff]
    %v302 = vld [vmem:[#allocation2 + $0x800] sm:$0xff]
    %v303 = vld [vmem:[#allocation2 + $0x808] sm:$0xff]
    %v304 = vld [vmem:[#allocation2 + $0x810] sm:$0xff]
    %v305 = vld [vmem:[#allocation2 + $0x818] sm:$0xff]
    %v306 = vld [vmem:[#allocation2 + $0x820] sm:$0xff]
    %v307 = vld [vmem:[#allocation2 + $0x828] sm:$0xff]
    %v308 = vld [vmem:[#allocation2 + $0x830] sm:$0xff]
    %v309 = vld [vmem:[#allocation2 + $0x838] sm:$0xff]
    %v310 = vld [vmem:[#allocation2 + $0x840] sm:$0xff]
    %v311 = vld [vmem:[#allocation2 + $0x848] sm:$0xff]
    %v312 = vld [vmem:[#allocation2 + $0x850] sm:$0xff]
    %v313 = vld [vmem:[#allocation2 + $0x858] sm:$0xff]
    %v314 = vld [vmem:[#allocation2 + $0x860] sm:$0xff]
    %v315 = vld [vmem:[#allocation2 + $0x868] sm:$0xff]
    %v316 = vld [vmem:[#allocation2 + $0x870] sm:$0xff]
    %v317 = vld [vmem:[#allocation2 + $0x878] sm:$0xff]
    %v318 = vld [vmem:[#allocation2 + $0x880] sm:$0xff]
    %v319 = vld [vmem:[#allocation2 + $0x888] sm:$0xff]
    %v320 = vld [vmem:[#allocation2 + $0x890] sm:$0xff]
    %v321 = vld [vmem:[#allocation2 + $0x898] sm:$0xff]
    %v322 = vld [vmem:[#allocation2 + $0x8a0] sm:$0xff]
    %v323 = vld [vmem:[#allocation2 + $0x8a8] sm:$0xff]
    %v324 = vld [vmem:[#allocation2 + $0x8b0] sm:$0xff]
    %v325 = vld [vmem:[#allocation2 + $0x8b8] sm:$0xff]
    %v326 = vld [vmem:[#allocation2 + $0x8c0] sm:$0xff]
    %v327 = vld [vmem:[#allocation2 + $0x8c8] sm:$0xff]
    %v328 = vld [vmem:[#allocation2 + $0x8d0] sm:$0xff]
    %v329 = vld [vmem:[#allocation2 + $0x8d8] sm:$0xff]
    %v330 = vld [vmem:[#allocation2 + $0x8e0] sm:$0xff]
    %v331 = vld [vmem:[#allocation2 + $0x8e8] sm:$0xff]
    %v332 = vld [vmem:[#allocation2 + $0x8f0] sm:$0xff]
    %v333 = vld [vmem:[#allocation2 + $0x8f8] sm:$0xff]
    %v334 = vld [vmem:[#allocation2 + $0x900] sm:$0xff]
    %v335 = vld [vmem:[#allocation2 + $0x908] sm:$0xff]
    %v336 = vld [vmem:[#allocation2 + $0x910] sm:$0xff]
    %v337 = vld [vmem:[#allocation2 + $0x918] sm:$0xff]
    %v338 = vld [vmem:[#allocation2 + $0x920] sm:$0xff]
    %v339 = vld [vmem:[#allocation2 + $0x928] sm:$0xff]
    %v340 = vld [vmem:[#allocation2 + $0x930] sm:$0xff]
    %v341 = vld [vmem:[#allocation2 + $0x938] sm:$0xff]
    %v342 = vld [vmem:[#allocation2 + $0x940] sm:$0xff]
    %v343 = vld [vmem:[#allocation2 + $0x948] sm:$0xff]
    %v344 = vld [vmem:[#allocation2 + $0x950] sm:$0xff]
    %v345 = vld [vmem:[#allocation2 + $0x958] sm:$0xff]
    %v346 = vld [vmem:[#allocation2 + $0x960] sm:$0xff]
    %v347 = vld [vmem:[#allocation2 + $0x968] sm:$0xff]
    %v348 = vld [vmem:[#allocation2 + $0x970] sm:$0xff]
    %v349 = vld [vmem:[#allocation2 + $0x978] sm:$0xff]
    %v350 = vld [vmem:[#allocation2 + $0x980] sm:$0xff]
    %v351 = vld [vmem:[#allocation2 + $0x988] sm:$0xff]
    %v352 = vld [vmem:[#allocation2 + $0x990] sm:$0xff]
    %v353 = vld [vmem:[#allocation2 + $0x998] sm:$0xff]
    %v354 = vld [vmem:[#allocation2 + $0x9a0] sm:$0xff]
    %v355 = vld [vmem:[#allocation2 + $0x9a8] sm:$0xff]
    %v356 = vld [vmem:[#allocation2 + $0x9b0] sm:$0xff]
    %v357 = vld [vmem:[#allocation2 + $0x9b8] sm:$0xff]
    %v358 = vld [vmem:[#allocation2 + $0x9c0] sm:$0xff]
    %v359 = vld [vmem:[#allocation2 + $0x9c8] sm:$0xff]
    %v360 = vld [vmem:[#allocation2 + $0x9d0] sm:$0xff]
    %v361 = vld [vmem:[#allocation2 + $0x9d8] sm:$0xff]
    %v362 = vld [vmem:[#allocation2 + $0x9e0] sm:$0xff]
    %v363 = vld [vmem:[#allocation2 + $0x9e8] sm:$0xff]
    %v364 = vld [vmem:[#allocation2 + $0x9f0] sm:$0xff]
    %v365 = vld [vmem:[#allocation2 + $0x9f8] sm:$0xff]
    %v366 = vld [vmem:[#allocation2 + $0xa00] sm:$0xff]
    %v367 = vld [vmem:[#allocation2 + $0xa08] sm:$0xff]
    %v368 = vld [vmem:[#allocation2 + $0xa10] sm:$0xff]
    %v369 = vld [vmem:[#allocation2 + $0xa18] sm:$0xff]
    %v370 = vld [vmem:[#allocation2 + $0xa20] sm:$0xff]
    %v371 = vld [vmem:[#allocation2 + $0xa28] sm:$0xff]
    %v372 = vld [vmem:[#allocation2 + $0xa30] sm:$0xff]
    %v373 = vld [vmem:[#allocation2 + $0xa38] sm:$0xff]
    %v374 = vld [vmem:[#allocation2 + $0xa40] sm:$0xff]
    %v375 = vld [vmem:[#allocation2 + $0xa48] sm:$0xff]
    %v376 = vld [vmem:[#allocation2 + $0xa50] sm:$0xff]
    %v377 = vld [vmem:[#allocation2 + $0xa58] sm:$0xff]
    %v378 = vld [vmem:[#allocation2 + $0xa60] sm:$0xff]
    %v379 = vld [vmem:[#allocation2 + $0xa68] sm:$0xff]
    %v380 = vld [vmem:[#allocation2 + $0xa70] sm:$0xff]
    %v381 = vld [vmem:[#allocation2 + $0xa78] sm:$0xff]
    %v382 = vld [vmem:[#allocation2 + $0xa80] sm:$0xff]
    %v383 = vld [vmem:[#allocation2 + $0xa88] sm:$0xff]
    %v384 = vld [vmem:[#allocation2 + $0xa90] sm:$0xff]
    %v385 = vld [vmem:[#allocation2 + $0xa98] sm:$0xff]
    %v386 = vld [vmem:[#allocation2 + $0xaa0] sm:$0xff]
    %v387 = vld [vmem:[#allocation2 + $0xaa8] sm:$0xff]
    %v388 = vld [vmem:[#allocation2 + $0xab0] sm:$0xff]
    %v389 = vld [vmem:[#allocation2 + $0xab8] sm:$0xff]
    %v390 = vld [vmem:[#allocation2 + $0xac0] sm:$0xff]
    %v391 = vld [vmem:[#allocation2 + $0xac8] sm:$0xff]
    %v392 = vld [vmem:[#allocation2 + $0xad0] sm:$0xff]
    %v393 = vld [vmem:[#allocation2 + $0xad8] sm:$0xff]
    %v394 = vld [vmem:[#allocation2 + $0xae0] sm:$0xff]
    %v395 = vld [vmem:[#allocation2 + $0xae8] sm:$0xff]
    %v396 = vld [vmem:[#allocation2 + $0xaf0] sm:$0xff]
    %v397 = vld [vmem:[#allocation2 + $0xaf8] sm:$0xff]
    %v398 = vld [vmem:[#allocation2 + $0xb00] sm:$0xff]
    %v399 = vld [vmem:[#allocation2 + $0xb08] sm:$0xff]
    %v400 = vld [vmem:[#allocation2 + $0xb10] sm:$0xff]
    %v401 = vld [vmem:[#allocation2 + $0xb18] sm:$0xff]
    %v402 = vld [vmem:[#allocation2 + $0xb20] sm:$0xff]
    %v403 = vld [vmem:[#allocation2 + $0xb28] sm:$0xff]
    %v404 = vld [vmem:[#allocation2 + $0xb30] sm:$0xff]
    %v405 = vld [vmem:[#allocation2 + $0xb38] sm:$0xff]
    %v406 = vld [vmem:[#allocation2 + $0xb40] sm:$0xff]
    %v407 = vld [vmem:[#allocation2 + $0xb48] sm:$0xff]
    %v408 = vld [vmem:[#allocation2 + $0xb50] sm:$0xff]
    %v409 = vld [vmem:[#allocation2 + $0xb58] sm:$0xff]
    %v410 = vld [vmem:[#allocation2 + $0xb60] sm:$0xff]
    %v411 = vld [vmem:[#allocation2 + $0xb68] sm:$0xff]
    %v412 = vld [vmem:[#allocation2 + $0xb70] sm:$0xff]
    %v413 = vld [vmem:[#allocation2 + $0xb78] sm:$0xff]
    %v414 = vld [vmem:[#allocation2 + $0xb80] sm:$0xff]
    %v415 = vld [vmem:[#allocation2 + $0xb88] sm:$0xff]
    %v416 = vld [vmem:[#allocation2 + $0xb90] sm:$0xff]
    %v417 = vld [vmem:[#allocation2 + $0xb98] sm:$0xff]
    %v418 = vld [vmem:[#allocation2 + $0xba0] sm:$0xff]
    %v419 = vld [vmem:[#allocation2 + $0xba8] sm:$0xff]
    %v420 = vld [vmem:[#allocation2 + $0xbb0] sm:$0xff]
    %v421 = vld [vmem:[#allocation2 + $0xbb8] sm:$0xff]
    %v422 = vld [vmem:[#allocation2 + $0xbc0] sm:$0xff]
    %v423 = vld [vmem:[#allocation2 + $0xbc8] sm:$0xff]
    %v424 = vld [vmem:[#allocation2 + $0xbd0] sm:$0xff]
    %v425 = vld [vmem:[#allocation2 + $0xbd8] sm:$0xff]
    %v426 = vld [vmem:[#allocation2 + $0xbe0] sm:$0xff]
    %v427 = vld [vmem:[#allocation2 + $0xbe8] sm:$0xff]
    %v428 = vld [vmem:[#allocation2 + $0xbf0] sm:$0xff]
    %v429 = vld [vmem:[#allocation2 + $0xbf8] sm:$0xff]
    %v430 = vld [vmem:[#allocation2 + $0xc00] sm:$0xff]
    %v431 = vld [vmem:[#allocation2 + $0xc08] sm:$0xff]
    %v432 = vld [vmem:[#allocation2 + $0xc10] sm:$0xff]
    %v433 = vld [vmem:[#allocation2 + $0xc18] sm:$0xff]
    %v434 = vld [vmem:[#allocation2 + $0xc20] sm:$0xff]
    %v435 = vld [vmem:[#allocation2 + $0xc28] sm:$0xff]
    %v436 = vld [vmem:[#allocation2 + $0xc30] sm:$0xff]
    %v437 = vld [vmem:[#allocation2 + $0xc38] sm:$0xff]
    %v438 = vld [vmem:[#allocation2 + $0xc40] sm:$0xff]
    %v439 = vld [vmem:[#allocation2 + $0xc48] sm:$0xff]
    %v440 = vld [vmem:[#allocation2 + $0xc50] sm:$0xff]
    %v441 = vld [vmem:[#allocation2 + $0xc58] sm:$0xff]
    %v442 = vld [vmem:[#allocation2 + $0xc60] sm:$0xff]
    %v443 = vld [vmem:[#allocation2 + $0xc68] sm:$0xff]
    %v444 = vld [vmem:[#allocation2 + $0xc70] sm:$0xff]
    %v445 = vld [vmem:[#allocation2 + $0xc78] sm:$0xff]
    %v446 = vld [vmem:[#allocation2 + $0xc80] sm:$0xff]
    %v447 = vld [vmem:[#allocation2 + $0xc88] sm:$0xff]
    %v448 = vld [vmem:[#allocation2 + $0xc90] sm:$0xff]
    %v449 = vld [vmem:[#allocation2 + $0xc98] sm:$0xff]
    %v450 = vld [vmem:[#allocation2 + $0xca0] sm:$0xff]
    %v451 = vld [vmem:[#allocation2 + $0xca8] sm:$0xff]
    %v452 = vld [vmem:[#allocation2 + $0xcb0] sm:$0xff]
    %v453 = vld [vmem:[#allocation2 + $0xcb8] sm:$0xff]
    %v454 = vld [vmem:[#allocation2 + $0xcc0] sm:$0xff]
    %v455 = vld [vmem:[#allocation2 + $0xcc8] sm:$0xff]
    %v456 = vld [vmem:[#allocation2 + $0xcd0] sm:$0xff]
    %v457 = vld [vmem:[#allocation2 + $0xcd8] sm:$0xff]
    %v458 = vld [vmem:[#allocation2 + $0xce0] sm:$0xff]
    %v459 = vld [vmem:[#allocation2 + $0xce8] sm:$0xff]
    %v460 = vld [vmem:[#allocation2 + $0xcf0] sm:$0xff]
    %v461 = vld [vmem:[#allocation2 + $0xcf8] sm:$0xff]
    %v462 = vld [vmem:[#allocation2 + $0xd00] sm:$0xff]
    %v463 = vld [vmem:[#allocation2 + $0xd08] sm:$0xff]
    %v464 = vld [vmem:[#allocation2 + $0xd10] sm:$0xff]
    %v465 = vld [vmem:[#allocation2 + $0xd18] sm:$0xff]
    %v466 = vld [vmem:[#allocation2 + $0xd20] sm:$0xff]
    %v467 = vld [vmem:[#allocation2 + $0xd28] sm:$0xff]
    %v468 = vld [vmem:[#allocation2 + $0xd30] sm:$0xff]
    %v469 = vld [vmem:[#allocation2 + $0xd38] sm:$0xff]
    %v470 = vld [vmem:[#allocation2 + $0xd40] sm:$0xff]
    %v471 = vld [vmem:[#allocation2 + $0xd48] sm:$0xff]
    %v472 = vld [vmem:[#allocation2 + $0xd50] sm:$0xff]
    %v473 = vld [vmem:[#allocation2 + $0xd58] sm:$0xff]
    %v474 = vld [vmem:[#allocation2 + $0xd60] sm:$0xff]
    %v475 = vld [vmem:[#allocation2 + $0xd68] sm:$0xff]
    %v476 = vld [vmem:[#allocation2 + $0xd70] sm:$0xff]
    %v477 = vld [vmem:[#allocation2 + $0xd78] sm:$0xff]
    %v478 = vld [vmem:[#allocation2 + $0xd80] sm:$0xff]
    %v479 = vld [vmem:[#allocation2 + $0xd88] sm:$0xff]
    %v480 = vld [vmem:[#allocation2 + $0xd90] sm:$0xff]
    %v481 = vld [vmem:[#allocation2 + $0xd98] sm:$0xff]
    %v482 = vld [vmem:[#allocation2 + $0xda0] sm:$0xff]
    %v483 = vld [vmem:[#allocation2 + $0xda8] sm:$0xff]
    %v484 = vld [vmem:[#allocation2 + $0xdb0] sm:$0xff]
    %v485 = vld [vmem:[#allocation2 + $0xdb8] sm:$0xff]
    %v486 = vld [vmem:[#allocation2 + $0xdc0] sm:$0xff]
    %v487 = vld [vmem:[#allocation2 + $0xdc8] sm:$0xff]
    %v488 = vld [vmem:[#allocation2 + $0xdd0] sm:$0xff]
    %v489 = vld [vmem:[#allocation2 + $0xdd8] sm:$0xff]
    %v490 = vld [vmem:[#allocation2 + $0xde0] sm:$0xff]
    %v491 = vld [vmem:[#allocation2 + $0xde8] sm:$0xff]
    %v492 = vld [vmem:[#allocation2 + $0xdf0] sm:$0xff]
    %v493 = vld [vmem:[#allocation2 + $0xdf8] sm:$0xff]
    %v494 = vld [vmem:[#allocation2 + $0xe00] sm:$0xff]
    %v495 = vld [vmem:[#allocation2 + $0xe08] sm:$0xff]
    %v496 = vld [vmem:[#allocation2 + $0xe10] sm:$0xff]
    %v497 = vld [vmem:[#allocation2 + $0xe18] sm:$0xff]
    %v498 = vld [vmem:[#allocation2 + $0xe20] sm:$0xff]
    %v499 = vld [vmem:[#allocation2 + $0xe28] sm:$0xff]
    %v500 = vld [vmem:[#allocation2 + $0xe30] sm:$0xff]
    %v501 = vld [vmem:[#allocation2 + $0xe38] sm:$0xff]
    %v502 = vld [vmem:[#allocation2 + $0xe40] sm:$0xff]
    %v503 = vld [vmem:[#allocation2 + $0xe48] sm:$0xff]
    %v504 = vld [vmem:[#allocation2 + $0xe50] sm:$0xff]
    %v505 = vld [vmem:[#allocation2 + $0xe58] sm:$0xff]
    %v506 = vld [vmem:[#allocation2 + $0xe60] sm:$0xff]
    %v507 = vld [vmem:[#allocation2 + $0xe68] sm:$0xff]
    %v508 = vld [vmem:[#allocation2 + $0xe70] sm:$0xff]
    %v509 = vld [vmem:[#allocation2 + $0xe78] sm:$0xff]
    %v510 = vld [vmem:[#allocation2 + $0xe80] sm:$0xff]
    %v511 = vld [vmem:[#allocation2 + $0xe88] sm:$0xff]
    %v512 = vld [vmem:[#allocation2 + $0xe90] sm:$0xff]
    %v513 = vld [vmem:[#allocation2 + $0xe98] sm:$0xff]
    %v514 = vld [vmem:[#allocation2 + $0xea0] sm:$0xff]
    %v515 = vld [vmem:[#allocation2 + $0xea8] sm:$0xff]
    %v516 = vld [vmem:[#allocation2 + $0xeb0] sm:$0xff]
    %v517 = vld [vmem:[#allocation2 + $0xeb8] sm:$0xff]
    %v518 = vld [vmem:[#allocation2 + $0xec0] sm:$0xff]
    %v519 = vld [vmem:[#allocation2 + $0xec8] sm:$0xff]
    %v520 = vld [vmem:[#allocation2 + $0xed0] sm:$0xff]
    %v521 = vld [vmem:[#allocation2 + $0xed8] sm:$0xff]
    %v522 = vld [vmem:[#allocation2 + $0xee0] sm:$0xff]
    %v523 = vld [vmem:[#allocation2 + $0xee8] sm:$0xff]
    %v524 = vld [vmem:[#allocation2 + $0xef0] sm:$0xff]
    %v525 = vld [vmem:[#allocation2 + $0xef8] sm:$0xff]
    %v526 = vld [vmem:[#allocation2 + $0xf00] sm:$0xff]
    %v527 = vld [vmem:[#allocation2 + $0xf08] sm:$0xff]
    %v528 = vld [vmem:[#allocation2 + $0xf10] sm:$0xff]
    %v529 = vld [vmem:[#allocation2 + $0xf18] sm:$0xff]
    %v530 = vld [vmem:[#allocation2 + $0xf20] sm:$0xff]
    %v531 = vld [vmem:[#allocation2 + $0xf28] sm:$0xff]
    %v532 = vld [vmem:[#allocation2 + $0xf30] sm:$0xff]
    %v533 = vld [vmem:[#allocation2 + $0xf38] sm:$0xff]
    %v534 = vld [vmem:[#allocation2 + $0xf40] sm:$0xff]
    %v535 = vld [vmem:[#allocation2 + $0xf48] sm:$0xff]
    %v536 = vld [vmem:[#allocation2 + $0xf50] sm:$0xff]
    %v537 = vld [vmem:[#allocation2 + $0xf58] sm:$0xff]
    %v538 = vld [vmem:[#allocation2 + $0xf60] sm:$0xff]
    %v539 = vld [vmem:[#allocation2 + $0xf68] sm:$0xff]
    %v540 = vld [vmem:[#allocation2 + $0xf70] sm:$0xff]
    %v541 = vld [vmem:[#allocation2 + $0xf78] sm:$0xff]
    %v542 = vld [vmem:[#allocation2 + $0xf80] sm:$0xff]
    %v543 = vld [vmem:[#allocation2 + $0xf88] sm:$0xff]
    %v544 = vld [vmem:[#allocation2 + $0xf90] sm:$0xff]
    %v545 = vld [vmem:[#allocation2 + $0xf98] sm:$0xff]
    %v546 = vld [vmem:[#allocation2 + $0xfa0] sm:$0xff]
    %v547 = vld [vmem:[#allocation2 + $0xfa8] sm:$0xff]
    %v548 = vld [vmem:[#allocation2 + $0xfb0] sm:$0xff]
    %v549 = vld [vmem:[#allocation2 + $0xfb8] sm:$0xff]
    %v550 = vld [vmem:[#allocation2 + $0xfc0] sm:$0xff]
    %v551 = vld [vmem:[#allocation2 + $0xfc8] sm:$0xff]
    %v552 = vld [vmem:[#allocation2 + $0xfd0] sm:$0xff]
    %v553 = vld [vmem:[#allocation2 + $0xfd8] sm:$0xff]
    %v554 = vld [vmem:[#allocation2 + $0xfe0] sm:$0xff]
    %v555 = vld [vmem:[#allocation2 + $0xfe8] sm:$0xff]
    %v556 = vld [vmem:[#allocation2 + $0xff0] sm:$0xff]
    %v557 = vld [vmem:[#allocation2 + $0xff8] sm:$0xff]
    %v558 = vld [vmem:[#allocation2 + $0x1000] sm:$0xff]
    %v559 = vld [vmem:[#allocation2 + $0x1008] sm:$0xff]
    %v560 = vld [vmem:[#allocation2 + $0x1010] sm:$0xff]
    %v561 = vld [vmem:[#allocation2 + $0x1018] sm:$0xff]
    %v562 = vld [vmem:[#allocation2 + $0x1020] sm:$0xff]
    %v563 = vld [vmem:[#allocation2 + $0x1028] sm:$0xff]
    %v564 = vld [vmem:[#allocation2 + $0x1030] sm:$0xff]
    %v565 = vld [vmem:[#allocation2 + $0x1038] sm:$0xff]
    %v566 = vld [vmem:[#allocation2 + $0x1040] sm:$0xff]
    %v567 = vld [vmem:[#allocation2 + $0x1048] sm:$0xff]
    %v568 = vld [vmem:[#allocation2 + $0x1050] sm:$0xff]
    %v569 = vld [vmem:[#allocation2 + $0x1058] sm:$0xff]
    %v570 = vld [vmem:[#allocation2 + $0x1060] sm:$0xff]
    %v571 = vld [vmem:[#allocation2 + $0x1068] sm:$0xff]
    %v572 = vld [vmem:[#allocation2 + $0x1070] sm:$0xff]
    %v573 = vld [vmem:[#allocation2 + $0x1078] sm:$0xff]
    %v574 = vld [vmem:[#allocation2 + $0x1080] sm:$0xff]
    %v575 = vld [vmem:[#allocation2 + $0x1088] sm:$0xff]
    %v576 = vld [vmem:[#allocation2 + $0x1090] sm:$0xff]
    %v577 = vld [vmem:[#allocation2 + $0x1098] sm:$0xff]
    %v578 = vld [vmem:[#allocation2 + $0x10a0] sm:$0xff]
    %v579 = vld [vmem:[#allocation2 + $0x10a8] sm:$0xff]
    %v580 = vld [vmem:[#allocation2 + $0x10b0] sm:$0xff]
    %v581 = vld [vmem:[#allocation2 + $0x10b8] sm:$0xff]
    %v582 = vld [vmem:[#allocation2 + $0x10c0] sm:$0xff]
    %v583 = vld [vmem:[#allocation2 + $0x10c8] sm:$0xff]
    %v584 = vld [vmem:[#allocation2 + $0x10d0] sm:$0xff]
    %v585 = vld [vmem:[#allocation2 + $0x10d8] sm:$0xff]
    %v586 = vld [vmem:[#allocation2 + $0x10e0] sm:$0xff]
    %v587 = vld [vmem:[#allocation2 + $0x10e8] sm:$0xff]
    %v588 = vld [vmem:[#allocation2 + $0x10f0] sm:$0xff]
    %v589 = vld [vmem:[#allocation2 + $0x10f8] sm:$0xff]
    %v590 = vld [vmem:[#allocation2 + $0x1100] sm:$0xff]
    %v591 = vld [vmem:[#allocation2 + $0x1108] sm:$0xff]
    %v592 = vld [vmem:[#allocation2 + $0x1110] sm:$0xff]
    %v593 = vld [vmem:[#allocation2 + $0x1118] sm:$0xff]
    %v594 = vld [vmem:[#allocation2 + $0x1120] sm:$0xff]
    %v595 = vld [vmem:[#allocation2 + $0x1128] sm:$0xff]
    %v596 = vld [vmem:[#allocation2 + $0x1130] sm:$0xff]
    %v597 = vld [vmem:[#allocation2 + $0x1138] sm:$0xff]
    %v598 = vld [vmem:[#allocation2 + $0x1140] sm:$0xff]
    %v599 = vld [vmem:[#allocation2 + $0x1148] sm:$0xff]
    %v600 = vld [vmem:[#allocation2 + $0x1150] sm:$0xff]
    %v601 = vld [vmem:[#allocation2 + $0x1158] sm:$0xff]
    %v602 = vld [vmem:[#allocation2 + $0x1160] sm:$0xff]
    %v603 = vld [vmem:[#allocation2 + $0x1168] sm:$0xff]
    %v604 = vld [vmem:[#allocation2 + $0x1170] sm:$0xff]
    %v605 = vld [vmem:[#allocation2 + $0x1178] sm:$0xff]
    %v606 = vld [vmem:[#allocation2 + $0x1180] sm:$0xff]
    %v607 = vld [vmem:[#allocation2 + $0x1188] sm:$0xff]
    %v608 = vld [vmem:[#allocation2 + $0x1190] sm:$0xff]
    %v609 = vld [vmem:[#allocation2 + $0x1198] sm:$0xff]
    %v610 = vld [vmem:[#allocation2 + $0x11a0] sm:$0xff]
    %v611 = vld [vmem:[#allocation2 + $0x11a8] sm:$0xff]
    %v612 = vld [vmem:[#allocation2 + $0x11b0] sm:$0xff]
    %v613 = vld [vmem:[#allocation2 + $0x11b8] sm:$0xff]
    %v614 = vld [vmem:[#allocation2 + $0x11c0] sm:$0xff]
    %v615 = vld [vmem:[#allocation2 + $0x11c8] sm:$0xff]
    %v616 = vld [vmem:[#allocation2 + $0x11d0] sm:$0xff]
    %v617 = vld [vmem:[#allocation2 + $0x11d8] sm:$0xff]
    %v618 = vld [vmem:[#allocation2 + $0x11e0] sm:$0xff]
    %v619 = vld [vmem:[#allocation2 + $0x11e8] sm:$0xff]
    %v620 = vld [vmem:[#allocation2 + $0x11f0] sm:$0xff]
    %v621 = vld [vmem:[#allocation2 + $0x11f8] sm:$0xff]
    %v622 = vld [vmem:[#allocation2 + $0x1200] sm:$0xff]
    %v623 = vld [vmem:[#allocation2 + $0x1208] sm:$0xff]
    %v624 = vld [vmem:[#allocation2 + $0x1210] sm:$0xff]
    %v625 = vld [vmem:[#allocation2 + $0x1218] sm:$0xff]
    %v626 = vld [vmem:[#allocation2 + $0x1220] sm:$0xff]
    %v627 = vld [vmem:[#allocation2 + $0x1228] sm:$0xff]
    %v628 = vld [vmem:[#allocation2 + $0x1230] sm:$0xff]
    %v629 = vld [vmem:[#allocation2 + $0x1238] sm:$0xff]
    %v630 = vld [vmem:[#allocation2 + $0x1240] sm:$0xff]
    %v631 = vld [vmem:[#allocation2 + $0x1248] sm:$0xff]
    %v632 = vld [vmem:[#allocation2 + $0x1250] sm:$0xff]
    %v633 = vld [vmem:[#allocation2 + $0x1258] sm:$0xff]
    %v634 = vld [vmem:[#allocation2 + $0x1260] sm:$0xff]
    %v635 = vld [vmem:[#allocation2 + $0x1268] sm:$0xff]
    %v636 = vld [vmem:[#allocation2 + $0x1270] sm:$0xff]
    %v637 = vld [vmem:[#allocation2 + $0x1278] sm:$0xff]
    %v638 = vld [vmem:[#allocation2 + $0x1280] sm:$0xff]
    %v639 = vld [vmem:[#allocation2 + $0x1288] sm:$0xff]
    %v640 = vld [vmem:[#allocation2 + $0x1290] sm:$0xff]
    %v641 = vld [vmem:[#allocation2 + $0x1298] sm:$0xff]
    %v642 = vld [vmem:[#allocation2 + $0x12a0] sm:$0xff]
    %v643 = vld [vmem:[#allocation2 + $0x12a8] sm:$0xff]
    %v644 = vld [vmem:[#allocation2 + $0x12b0] sm:$0xff]
    %v645 = vld [vmem:[#allocation2 + $0x12b8] sm:$0xff]
    %v646 = vld [vmem:[#allocation2 + $0x12c0] sm:$0xff]
    %v647 = vld [vmem:[#allocation2 + $0x12c8] sm:$0xff]
    %v648 = vld [vmem:[#allocation2 + $0x12d0] sm:$0xff]
    %v649 = vld [vmem:[#allocation2 + $0x12d8] sm:$0xff]
    %v650 = vld [vmem:[#allocation2 + $0x12e0] sm:$0xff]
    %v651 = vld [vmem:[#allocation2 + $0x12e8] sm:$0xff]
    %v652 = vld [vmem:[#allocation2 + $0x12f0] sm:$0xff]
    %v653 = vld [vmem:[#allocation2 + $0x12f8] sm:$0xff]
    %v654 = vld [vmem:[#allocation2 + $0x1300] sm:$0xff]
    %v655 = vld [vmem:[#allocation2 + $0x1308] sm:$0xff]
    %v656 = vld [vmem:[#allocation2 + $0x1310] sm:$0xff]
    %v657 = vld [vmem:[#allocation2 + $0x1318] sm:$0xff]
    %v658 = vld [vmem:[#allocation2 + $0x1320] sm:$0xff]
    %v659 = vld [vmem:[#allocation2 + $0x1328] sm:$0xff]
    %v660 = vld [vmem:[#allocation2 + $0x1330] sm:$0xff]
    %v661 = vld [vmem:[#allocation2 + $0x1338] sm:$0xff]
    %v662 = vld [vmem:[#allocation2 + $0x1340] sm:$0xff]
    %v663 = vld [vmem:[#allocation2 + $0x1348] sm:$0xff]
    %v664 = vld [vmem:[#allocation2 + $0x1350] sm:$0xff]
    %v665 = vld [vmem:[#allocation2 + $0x1358] sm:$0xff]
    %v666 = vld [vmem:[#allocation2 + $0x1360] sm:$0xff]
    %v667 = vld [vmem:[#allocation2 + $0x1368] sm:$0xff]
    %v668 = vld [vmem:[#allocation2 + $0x1370] sm:$0xff]
    %v669 = vld [vmem:[#allocation2 + $0x1378] sm:$0xff]
    %v670 = vld [vmem:[#allocation2 + $0x1380] sm:$0xff]
    %v671 = vld [vmem:[#allocation2 + $0x1388] sm:$0xff]
    %v672 = vld [vmem:[#allocation2 + $0x1390] sm:$0xff]
    %v673 = vld [vmem:[#allocation2 + $0x1398] sm:$0xff]
    %v674 = vld [vmem:[#allocation2 + $0x13a0] sm:$0xff]
    %v675 = vld [vmem:[#allocation2 + $0x13a8] sm:$0xff]
    %v676 = vld [vmem:[#allocation2 + $0x13b0] sm:$0xff]
    %v677 = vld [vmem:[#allocation2 + $0x13b8] sm:$0xff]
    %v678 = vld [vmem:[#allocation2 + $0x13c0] sm:$0xff]
    %v679 = vld [vmem:[#allocation2 + $0x13c8] sm:$0xff]
    %v680 = vld [vmem:[#allocation2 + $0x13d0] sm:$0xff]
    %v681 = vld [vmem:[#allocation2 + $0x13d8] sm:$0xff]
    %v682 = vld [vmem:[#allocation2 + $0x13e0] sm:$0xff]
    %v683 = vld [vmem:[#allocation2 + $0x13e8] sm:$0xff]
    %v684 = vld [vmem:[#allocation2 + $0x13f0] sm:$0xff]
    %v685 = vld [vmem:[#allocation2 + $0x13f8] sm:$0xff]
    %v686 = vld [vmem:[#allocation2 + $0x1400] sm:$0xff]
    %v687 = vld [vmem:[#allocation2 + $0x1408] sm:$0xff]
    %v688 = vld [vmem:[#allocation2 + $0x1410] sm:$0xff]
    %v689 = vld [vmem:[#allocation2 + $0x1418] sm:$0xff]
    %v690 = vld [vmem:[#allocation2 + $0x1420] sm:$0xff]
    %v691 = vld [vmem:[#allocation2 + $0x1428] sm:$0xff]
    %v692 = vld [vmem:[#allocation2 + $0x1430] sm:$0xff]
    %v693 = vld [vmem:[#allocation2 + $0x1438] sm:$0xff]
    %v694 = vld [vmem:[#allocation2 + $0x1440] sm:$0xff]
    %v695 = vld [vmem:[#allocation2 + $0x1448] sm:$0xff]
    %v696 = vld [vmem:[#allocation2 + $0x1450] sm:$0xff]
    %v697 = vld [vmem:[#allocation2 + $0x1458] sm:$0xff]
    %v698 = vld [vmem:[#allocation2 + $0x1460] sm:$0xff]
    %v699 = vld [vmem:[#allocation2 + $0x1468] sm:$0xff]
    %v700 = vld [vmem:[#allocation2 + $0x1470] sm:$0xff]
    %v701 = vld [vmem:[#allocation2 + $0x1478] sm:$0xff]
    %v702 = vld [vmem:[#allocation2 + $0x1480] sm:$0xff]
    %v703 = vld [vmem:[#allocation2 + $0x1488] sm:$0xff]
    %v704 = vld [vmem:[#allocation2 + $0x1490] sm:$0xff]
    %v705 = vld [vmem:[#allocation2 + $0x1498] sm:$0xff]
    %v706 = vld [vmem:[#allocation2 + $0x14a0] sm:$0xff]
    %v707 = vld [vmem:[#allocation2 + $0x14a8] sm:$0xff]
    %v708 = vld [vmem:[#allocation2 + $0x14b0] sm:$0xff]
    %v709 = vld [vmem:[#allocation2 + $0x14b8] sm:$0xff]
    %v710 = vld [vmem:[#allocation2 + $0x14c0] sm:$0xff]
    %v711 = vld [vmem:[#allocation2 + $0x14c8] sm:$0xff]
    %v712 = vld [vmem:[#allocation2 + $0x14d0] sm:$0xff]
    %v713 = vld [vmem:[#allocation2 + $0x14d8] sm:$0xff]
    %v714 = vld [vmem:[#allocation2 + $0x14e0] sm:$0xff]
    %v715 = vld [vmem:[#allocation2 + $0x14e8] sm:$0xff]
    %v716 = vld [vmem:[#allocation2 + $0x14f0] sm:$0xff]
    %v717 = vld [vmem:[#allocation2 + $0x14f8] sm:$0xff]
    %v718 = vld [vmem:[#allocation2 + $0x1500] sm:$0xff]
    %v719 = vld [vmem:[#allocation2 + $0x1508] sm:$0xff]
    %v720 = vld [vmem:[#allocation2 + $0x1510] sm:$0xff]
    %v721 = vld [vmem:[#allocation2 + $0x1518] sm:$0xff]
    %v722 = vld [vmem:[#allocation2 + $0x1520] sm:$0xff]
    %v723 = vld [vmem:[#allocation2 + $0x1528] sm:$0xff]
    %v724 = vld [vmem:[#allocation2 + $0x1530] sm:$0xff]
    %v725 = vld [vmem:[#allocation2 + $0x1538] sm:$0xff]
    %v726 = vld [vmem:[#allocation2 + $0x1540] sm:$0xff]
    %v727 = vld [vmem:[#allocation2 + $0x1548] sm:$0xff]
    %v728 = vld [vmem:[#allocation2 + $0x1550] sm:$0xff]
    %v729 = vld [vmem:[#allocation2 + $0x1558] sm:$0xff]
    %v730 = vld [vmem:[#allocation2 + $0x1560] sm:$0xff]
    %v731 = vld [vmem:[#allocation2 + $0x1568] sm:$0xff]
    %v732 = vld [vmem:[#allocation2 + $0x1570] sm:$0xff]
    %v733 = vld [vmem:[#allocation2 + $0x1578] sm:$0xff]
    %v734 = vld [vmem:[#allocation2 + $0x1580] sm:$0xff]
    %v735 = vld [vmem:[#allocation2 + $0x1588] sm:$0xff]
    %v736 = vld [vmem:[#allocation2 + $0x1590] sm:$0xff]
    %v737 = vld [vmem:[#allocation2 + $0x1598] sm:$0xff]
    %v738 = vld [vmem:[#allocation2 + $0x15a0] sm:$0xff]
    %v739 = vld [vmem:[#allocation2 + $0x15a8] sm:$0xff]
    %v740 = vld [vmem:[#allocation2 + $0x15b0] sm:$0xff]
    %v741 = vld [vmem:[#allocation2 + $0x15b8] sm:$0xff]
    %v742 = vld [vmem:[#allocation2 + $0x15c0] sm:$0xff]
    %v743 = vld [vmem:[#allocation2 + $0x15c8] sm:$0xff]
    %v744 = vld [vmem:[#allocation2 + $0x15d0] sm:$0xff]
    %v745 = vld [vmem:[#allocation2 + $0x15d8] sm:$0xff]
    %v746 = vld [vmem:[#allocation2 + $0x15e0] sm:$0xff]
    %v747 = vld [vmem:[#allocation2 + $0x15e8] sm:$0xff]
    %v748 = vld [vmem:[#allocation2 + $0x15f0] sm:$0xff]
    %v749 = vld [vmem:[#allocation2 + $0x15f8] sm:$0xff]
    %v750 = vld [vmem:[#allocation2 + $0x1600] sm:$0xff]
    %v751 = vld [vmem:[#allocation2 + $0x1608] sm:$0xff]
    %v752 = vld [vmem:[#allocation2 + $0x1610] sm:$0xff]
    %v753 = vld [vmem:[#allocation2 + $0x1618] sm:$0xff]
    %v754 = vld [vmem:[#allocation2 + $0x1620] sm:$0xff]
    %v755 = vld [vmem:[#allocation2 + $0x1628] sm:$0xff]
    %v756 = vld [vmem:[#allocation2 + $0x1630] sm:$0xff]
    %v757 = vld [vmem:[#allocation2 + $0x1638] sm:$0xff]
    %v758 = vld [vmem:[#allocation2 + $0x1640] sm:$0xff]
    %v759 = vld [vmem:[#allocation2 + $0x1648] sm:$0xff]
    %v760 = vld [vmem:[#allocation2 + $0x1650] sm:$0xff]
    %v761 = vld [vmem:[#allocation2 + $0x1658] sm:$0xff]
    %v762 = vld [vmem:[#allocation2 + $0x1660] sm:$0xff]
    %v763 = vld [vmem:[#allocation2 + $0x1668] sm:$0xff]
    %v764 = vld [vmem:[#allocation2 + $0x1670] sm:$0xff]
    %v765 = vld [vmem:[#allocation2 + $0x1678] sm:$0xff]
    %v766 = vld [vmem:[#allocation2 + $0x1680] sm:$0xff]
    %v767 = vld [vmem:[#allocation2 + $0x1688] sm:$0xff]
    %v768 = vld [vmem:[#allocation2 + $0x1690] sm:$0xff]
    %v769 = vld [vmem:[#allocation2 + $0x1698] sm:$0xff]
    %v770 = vld [vmem:[#allocation2 + $0x16a0] sm:$0xff]
    %v771 = vld [vmem:[#allocation2 + $0x16a8] sm:$0xff]
    %v772 = vld [vmem:[#allocation2 + $0x16b0] sm:$0xff]
    %v773 = vld [vmem:[#allocation2 + $0x16b8] sm:$0xff]
    %v774 = vld [vmem:[#allocation2 + $0x16c0] sm:$0xff]
    %v775 = vld [vmem:[#allocation2 + $0x16c8] sm:$0xff]
    %v776 = vld [vmem:[#allocation2 + $0x16d0] sm:$0xff]
    %v777 = vld [vmem:[#allocation2 + $0x16d8] sm:$0xff]
    %v778 = vld [vmem:[#allocation2 + $0x16e0] sm:$0xff]
    %v779 = vld [vmem:[#allocation2 + $0x16e8] sm:$0xff]
    %v780 = vld [vmem:[#allocation2 + $0x16f0] sm:$0xff]
    %v781 = vld [vmem:[#allocation2 + $0x16f8] sm:$0xff]
    %v782 = vld [vmem:[#allocation2 + $0x1700] sm:$0xff]
    %v783 = vld [vmem:[#allocation2 + $0x1708] sm:$0xff]
    %v784 = vld [vmem:[#allocation2 + $0x1710] sm:$0xff]
    %v785 = vld [vmem:[#allocation2 + $0x1718] sm:$0xff]
    %v786 = vld [vmem:[#allocation2 + $0x1720] sm:$0xff]
    %v787 = vld [vmem:[#allocation2 + $0x1728] sm:$0xff]
    %v788 = vld [vmem:[#allocation2 + $0x1730] sm:$0xff]
    %v789 = vld [vmem:[#allocation2 + $0x1738] sm:$0xff]
    %v790 = vld [vmem:[#allocation2 + $0x1740] sm:$0xff]
    %v791 = vld [vmem:[#allocation2 + $0x1748] sm:$0xff]
    %v792 = vld [vmem:[#allocation2 + $0x1750] sm:$0xff]
    %v793 = vld [vmem:[#allocation2 + $0x1758] sm:$0xff]
    %v794 = vld [vmem:[#allocation2 + $0x1760] sm:$0xff]
    %v795 = vld [vmem:[#allocation2 + $0x1768] sm:$0xff]
    %v796 = vld [vmem:[#allocation2 + $0x1770] sm:$0xff]
    %v797 = vld [vmem:[#allocation2 + $0x1778] sm:$0xff]
    %v798 = vld [vmem:[#allocation2 + $0x1780] sm:$0xff]
    %v799 = vld [vmem:[#allocation2 + $0x1788] sm:$0xff]
    %v800 = vld [vmem:[#allocation2 + $0x1790] sm:$0xff]
    %v801 = vld [vmem:[#allocation2 + $0x1798] sm:$0xff]
    %v802 = vld [vmem:[#allocation2 + $0x17a0] sm:$0xff]
    %v803 = vld [vmem:[#allocation2 + $0x17a8] sm:$0xff]
    %v804 = vld [vmem:[#allocation2 + $0x17b0] sm:$0xff]
    %v805 = vld [vmem:[#allocation2 + $0x17b8] sm:$0xff]
    %v806 = vld [vmem:[#allocation2 + $0x17c0] sm:$0xff]
    %v807 = vld [vmem:[#allocation2 + $0x17c8] sm:$0xff]
    %v808 = vld [vmem:[#allocation2 + $0x17d0] sm:$0xff]
    %v809 = vld [vmem:[#allocation2 + $0x17d8] sm:$0xff]
    %v810 = vld [vmem:[#allocation2 + $0x17e0] sm:$0xff]
    %v811 = vld [vmem:[#allocation2 + $0x17e8] sm:$0xff]
    %v812 = vld [vmem:[#allocation2 + $0x17f0] sm:$0xff]
    %v813 = vld [vmem:[#allocation2 + $0x17f8] sm:$0xff]
    %v814 = vld [vmem:[#allocation2 + $0x1800] sm:$0xff]
    %v815 = vld [vmem:[#allocation2 + $0x1808] sm:$0xff]
    %v816 = vld [vmem:[#allocation2 + $0x1810] sm:$0xff]
    %v817 = vld [vmem:[#allocation2 + $0x1818] sm:$0xff]
    %v818 = vld [vmem:[#allocation2 + $0x1820] sm:$0xff]
    %v819 = vld [vmem:[#allocation2 + $0x1828] sm:$0xff]
    %v820 = vld [vmem:[#allocation2 + $0x1830] sm:$0xff]
    %v821 = vld [vmem:[#allocation2 + $0x1838] sm:$0xff]
    %v822 = vld [vmem:[#allocation2 + $0x1840] sm:$0xff]
    %v823 = vld [vmem:[#allocation2 + $0x1848] sm:$0xff]
    %v824 = vld [vmem:[#allocation2 + $0x1850] sm:$0xff]
    %v825 = vld [vmem:[#allocation2 + $0x1858] sm:$0xff]
    %v826 = vld [vmem:[#allocation2 + $0x1860] sm:$0xff]
    %v827 = vld [vmem:[#allocation2 + $0x1868] sm:$0xff]
    %v828 = vld [vmem:[#allocation2 + $0x1870] sm:$0xff]
    %v829 = vld [vmem:[#allocation2 + $0x1878] sm:$0xff]
    %v832 = vcombine.high %v44, %v44
    %v834 = vunpack.c.l.s4 1983009808
    %v835 = vunpack.c.0.s8 %v834
    %v836 = vlaneseq
    %v837 = vshrl.u32 %v836, 7
    %v838 = vsub.s32 %v835, %v837
    %v839 = vrot.slane %v44, %v838
    %v841 = vunpack.c.l.s4 1983009808
    %v842 = vunpack.c.0.s8 %v841
    %v843 = vlaneseq
    %v844 = vshrl.u32 %v843, 7
    %v845 = vsub.s32 %v842, %v844
    %v846 = vrot.slane %v832, %v845
    %v847 = vcombine.high %v839, %v839
    %v848 = vcombine.high %v846, %v846
    %v849 = vcombine.high %v45, %v45
    %v851 = vunpack.c.l.s4 1983009808
    %v852 = vunpack.c.0.s8 %v851
    %v853 = vlaneseq
    %v854 = vshrl.u32 %v853, 7
    %v855 = vsub.s32 %v852, %v854
    %v856 = vrot.slane %v45, %v855
    %v858 = vunpack.c.l.s4 1983009808
    %v859 = vunpack.c.0.s8 %v858
    %v860 = vlaneseq
    %v861 = vshrl.u32 %v860, 7
    %v862 = vsub.s32 %v859, %v861
    %v863 = vrot.slane %v849, %v862
    %v864 = vcombine.high %v856, %v856
    %vm871 = vcmask 130048
    %v872 = vsel %vm871, %v863, 0
    %874 = vmatprep.subr.mxu0 %v47
    %875 = vmatpush1.msra.mxu0 %v46
    %876 = vmatprep.subr.mxu0 %v55
    %877 = vmatpush1.msra.mxu0 %v54
    %878 = vmatprep.subr.mxu0 %v63
    %879 = vmatpush1.msra.mxu0 %v62
    %880 = vmatprep.subr.mxu0 %v71
    %881 = vmatpush1.msra.mxu0 %v70
    %882 = vmatprep.subr.mxu0 %v79
    %883 = vmatpush1.msra.mxu0 %v78
    %884 = vmatprep.subr.mxu0 %v87
    %885 = vmatpush1.msra.mxu0 %v86
    %886 = vmatprep.subr.mxu0 %v95
    %887 = vmatpush1.msra.mxu0 %v94
    %888 = vmatprep.subr.mxu0 %v103
    %889 = vmatpush1.msra.mxu0 %v102
    %890 = vmatprep.subr.mxu0 %v111
    %891 = vmatpush1.msra.mxu0 %v110
    %892 = vmatprep.subr.mxu0 %v119
    %893 = vmatpush1.msra.mxu0 %v118
    %894 = vmatprep.subr.mxu0 %v127
    %895 = vmatpush1.msra.mxu0 %v126
    %896 = vmatprep.subr.mxu0 %v135
    %897 = vmatpush1.msra.mxu0 %v134
    %898 = vmatprep.subr.mxu0 %v143
    %899 = vmatpush1.msra.mxu0 %v142
    %900 = vmatprep.subr.mxu0 %v151
    %901 = vmatpush1.msra.mxu0 %v150
    %902 = vmatprep.subr.mxu0 %v159
    %903 = vmatpush1.msra.mxu0 %v158
    %904 = vmatprep.subr.mxu0 %v167
    %905 = vmatpush1.msra.mxu0 %v166
    %906 = vmatprep.subr.mxu0 %v175
    %907 = vmatpush1.msra.mxu0 %v174
    %908 = vmatprep.subr.mxu0 %v183
    %909 = vmatpush1.msra.mxu0 %v182
    %910 = vmatprep.subr.mxu0 %v191
    %911 = vmatpush1.msra.mxu0 %v190
    %912 = vmatprep.subr.mxu0 %v199
    %913 = vmatpush1.msra.mxu0 %v198
    %914 = vmatprep.subr.mxu0 %v207
    %915 = vmatpush1.msra.mxu0 %v206
    %916 = vmatprep.subr.mxu0 %v215
    %917 = vmatpush1.msra.mxu0 %v214
    %918 = vmatprep.subr.mxu0 %v223
    %919 = vmatpush1.msra.mxu0 %v222
    %920 = vmatprep.subr.mxu0 %v231
    %921 = vmatpush1.msra.mxu0 %v230
    %922 = vmatprep.subr.mxu0 %v239
    %923 = vmatpush1.msra.mxu0 %v238
    %924 = vmatprep.subr.mxu0 %v247
    %925 = vmatpush1.msra.mxu0 %v246
    %926 = vmatprep.subr.mxu0 %v255
    %927 = vmatpush1.msra.mxu0 %v254
    %928 = vmatprep.subr.mxu0 %v263
    %929 = vmatpush1.msra.mxu0 %v262
    %930 = vmatprep.subr.mxu0 %v271
    %931 = vmatpush1.msra.mxu0 %v270
    %932 = vmatprep.subr.mxu0 %v279
    %933 = vmatpush1.msra.mxu0 %v278
    %934 = vmatprep.subr.mxu0 %v287
    %935 = vmatpush1.msra.mxu0 %v286
    %936 = vmatprep.subr.mxu0 %v295
    %937 = vmatpush1.msra.mxu0 %v294
    %938 = vmatprep.mubr.f32.mxu0 %v847
    %939 = vmatmul.mubr.f32.gmra.mrb[0].mxu0 %v839
    %v940 = vpop.f32.mrb[0].mxu0
    %v941 = vadd.f32 0.0, %v940
    %v942 = vpop.f32.mrb[0].mxu0
    %v943 = vadd.f32 0.0, %v942
    %944 = vdwg.mxu0
    %945 = vmatprep.subr.mxu0 %v303
    %946 = vmatpush1.msra.mxu0 %v302
    %947 = vmatprep.subr.mxu0 %v311
    %948 = vmatpush1.msra.mxu0 %v310
    %949 = vmatprep.subr.mxu0 %v319
    %950 = vmatpush1.msra.mxu0 %v318
    %951 = vmatprep.subr.mxu0 %v327
    %952 = vmatpush1.msra.mxu0 %v326
    %953 = vmatprep.subr.mxu0 %v335
    %954 = vmatpush1.msra.mxu0 %v334
    %955 = vmatprep.subr.mxu0 %v343
    %956 = vmatpush1.msra.mxu0 %v342
    %957 = vmatprep.subr.mxu0 %v351
    %958 = vmatpush1.msra.mxu0 %v350
    %959 = vmatprep.subr.mxu0 %v359
    %960 = vmatpush1.msra.mxu0 %v358
    %961 = vmatprep.subr.mxu0 %v367
    %962 = vmatpush1.msra.mxu0 %v366
    %963 = vmatprep.subr.mxu0 %v375
    %964 = vmatpush1.msra.mxu0 %v374
    %965 = vmatprep.subr.mxu0 %v383
    %966 = vmatpush1.msra.mxu0 %v382
    %967 = vmatprep.subr.mxu0 %v391
    %968 = vmatpush1.msra.mxu0 %v390
    %969 = vmatprep.subr.mxu0 %v399
    %970 = vmatpush1.msra.mxu0 %v398
    %971 = vmatprep.subr.mxu0 %v407
    %972 = vmatpush1.msra.mxu0 %v406
    %973 = vmatprep.subr.mxu0 %v415
    %974 = vmatpush1.msra.mxu0 %v414
    %975 = vmatprep.subr.mxu0 %v423
    %976 = vmatpush1.msra.mxu0 %v422
    %977 = vmatprep.subr.mxu0 %v431
    %978 = vmatpush1.msra.mxu0 %v430
    %979 = vmatprep.subr.mxu0 %v439
    %980 = vmatpush1.msra.mxu0 %v438
    %981 = vmatprep.subr.mxu0 %v447
    %982 = vmatpush1.msra.mxu0 %v446
    %983 = vmatprep.subr.mxu0 %v455
    %984 = vmatpush1.msra.mxu0 %v454
    %985 = vmatprep.subr.mxu0 %v463
    %986 = vmatpush1.msra.mxu0 %v462
    %987 = vmatprep.subr.mxu0 %v471
    %988 = vmatpush1.msra.mxu0 %v470
    %989 = vmatprep.subr.mxu0 %v479
    %990 = vmatpush1.msra.mxu0 %v478
    %991 = vmatprep.subr.mxu0 %v487
    %992 = vmatpush1.msra.mxu0 %v486
    %993 = vmatprep.subr.mxu0 %v495
    %994 = vmatpush1.msra.mxu0 %v494
    %995 = vmatprep.subr.mxu0 %v503
    %996 = vmatpush1.msra.mxu0 %v502
    %997 = vmatprep.subr.mxu0 %v511
    %998 = vmatpush1.msra.mxu0 %v510
    %999 = vmatprep.subr.mxu0 %v519
    %1000 = vmatpush1.msra.mxu0 %v518
    %1001 = vmatprep.subr.mxu0 %v527
    %1002 = vmatpush1.msra.mxu0 %v526
    %1003 = vmatprep.subr.mxu0 %v535
    %1004 = vmatpush1.msra.mxu0 %v534
    %1005 = vmatprep.subr.mxu0 %v543
    %1006 = vmatpush1.msra.mxu0 %v542
    %1007 = vmatprep.subr.mxu0 %v551
    %1008 = vmatpush1.msra.mxu0 %v550
    %1009 = vmatprep.mubr.f32.mxu0 %v848
    %1010 = vmatmul.mubr.f32.gmra.mrb[0].mxu0 %v846
    %v1011 = vpop.f32.mrb[0].mxu0
    %v1012 = vadd.f32 %v941, %v1011
    %v1013 = vpop.f32.mrb[0].mxu0
    %v1014 = vadd.f32 %v943, %v1013
    %1015 = vdwg.mxu0
    %1016 = vmatprep.subr.mxu0 %v559
    %1017 = vmatpush1.msra.mxu0 %v558
    %1018 = vmatprep.subr.mxu0 %v567
    %1019 = vmatpush1.msra.mxu0 %v566
    %1020 = vmatprep.subr.mxu0 %v575
    %1021 = vmatpush1.msra.mxu0 %v574
    %1022 = vmatprep.subr.mxu0 %v583
    %1023 = vmatpush1.msra.mxu0 %v582
    %1024 = vmatprep.subr.mxu0 %v591
    %1025 = vmatpush1.msra.mxu0 %v590
    %1026 = vmatprep.subr.mxu0 %v599
    %1027 = vmatpush1.msra.mxu0 %v598
    %1028 = vmatprep.subr.mxu0 %v607
    %1029 = vmatpush1.msra.mxu0 %v606
    %1030 = vmatprep.subr.mxu0 %v615
    %1031 = vmatpush1.msra.mxu0 %v614
    %1032 = vmatprep.subr.mxu0 %v623
    %1033 = vmatpush1.msra.mxu0 %v622
    %1034 = vmatprep.subr.mxu0 %v631
    %1035 = vmatpush1.msra.mxu0 %v630
    %1036 = vmatprep.subr.mxu0 %v639
    %1037 = vmatpush1.msra.mxu0 %v638
    %1038 = vmatprep.subr.mxu0 %v647
    %1039 = vmatpush1.msra.mxu0 %v646
    %1040 = vmatprep.subr.mxu0 %v655
    %1041 = vmatpush1.msra.mxu0 %v654
    %1042 = vmatprep.subr.mxu0 %v663
    %1043 = vmatpush1.msra.mxu0 %v662
    %1044 = vmatprep.subr.mxu0 %v671
    %1045 = vmatpush1.msra.mxu0 %v670
    %1046 = vmatprep.subr.mxu0 %v679
    %1047 = vmatpush1.msra.mxu0 %v678
    %1048 = vmatprep.subr.mxu0 %v687
    %1049 = vmatpush1.msra.mxu0 %v686
    %1050 = vmatprep.subr.mxu0 %v695
    %1051 = vmatpush1.msra.mxu0 %v694
    %1052 = vmatprep.subr.mxu0 %v703
    %1053 = vmatpush1.msra.mxu0 %v702
    %1054 = vmatprep.subr.mxu0 %v711
    %1055 = vmatpush1.msra.mxu0 %v710
    %1056 = vmatprep.subr.mxu0 %v719
    %1057 = vmatpush1.msra.mxu0 %v718
    %1058 = vmatprep.subr.mxu0 %v727
    %1059 = vmatpush1.msra.mxu0 %v726
    %1060 = vmatprep.subr.mxu0 %v735
    %1061 = vmatpush1.msra.mxu0 %v734
    %1062 = vmatprep.subr.mxu0 %v743
    %1063 = vmatpush1.msra.mxu0 %v742
    %1064 = vmatprep.subr.mxu0 %v751
    %1065 = vmatpush1.msra.mxu0 %v750
    %1066 = vmatprep.subr.mxu0 %v759
    %1067 = vmatpush1.msra.mxu0 %v758
    %1068 = vmatprep.subr.mxu0 %v767
    %1069 = vmatpush1.msra.mxu0 %v766
    %1070 = vmatprep.subr.mxu0 %v775
    %1071 = vmatpush1.msra.mxu0 %v774
    %1072 = vmatprep.subr.mxu0 %v783
    %1073 = vmatpush1.msra.mxu0 %v782
    %1074 = vmatprep.subr.mxu0 %v791
    %1075 = vmatpush1.msra.mxu0 %v790
    %1076 = vmatprep.subr.mxu0 %v799
    %1077 = vmatpush1.msra.mxu0 %v798
    %1078 = vmatprep.subr.mxu0 %v807
    %1079 = vmatpush1.msra.mxu0 %v806
    %1080 = vmatprep.mubr.f32.mxu0 %v864
    %1081 = vmatmul.mubr.f32.gmra.mrb[0].mxu0 %v856
    %v1082 = vpop.f32.mrb[0].mxu0
    %v1083 = vadd.f32 %v1012, %v1082
    %v1084 = vpop.f32.mrb[0].mxu0
    %v1085 = vadd.f32 %v1014, %v1084
    %1086 = vdwg.mxu0
    %1087 = vmatprep.subr.mxu0 %v815
    %1088 = vmatpush1.msra.mxu0 %v814
    %1089 = vmatprep.subr.mxu0 %v823
    %1090 = vmatpush1.msra.mxu0 %v822
    %1091 = vmatprep.subr.mxu0 0.0
    %1092 = vmatpush1.msra.mxu0 0.0
    %1093 = vmatprep.subr.mxu0 0.0
    %1094 = vmatpush1.msra.mxu0 0.0
    %1095 = vmatprep.subr.mxu0 0.0
    %1096 = vmatpush1.msra.mxu0 0.0
    %1097 = vmatprep.subr.mxu0 0.0
    %1098 = vmatpush1.msra.mxu0 0.0
    %1099 = vmatprep.subr.mxu0 0.0
    %1100 = vmatpush1.msra.mxu0 0.0
    %1101 = vmatprep.subr.mxu0 0.0
    %1102 = vmatpush1.msra.mxu0 0.0
    %1103 = vmatprep.subr.mxu0 0.0
    %1104 = vmatpush1.msra.mxu0 0.0
    %1105 = vmatprep.subr.mxu0 0.0
    %1106 = vmatpush1.msra.mxu0 0.0
    %1107 = vmatprep.subr.mxu0 0.0
    %1108 = vmatpush1.msra.mxu0 0.0
    %1109 = vmatprep.subr.mxu0 0.0
    %1110 = vmatpush1.msra.mxu0 0.0
    %1111 = vmatprep.subr.mxu0 0.0
    %1112 = vmatpush1.msra.mxu0 0.0
    %1113 = vmatprep.subr.mxu0 0.0
    %1114 = vmatpush1.msra.mxu0 0.0
    %1115 = vmatprep.subr.mxu0 0.0
    %1116 = vmatpush1.msra.mxu0 0.0
    %1117 = vmatprep.subr.mxu0 0.0
    %1118 = vmatpush1.msra.mxu0 0.0
    %1119 = vmatprep.subr.mxu0 0.0
    %1120 = vmatpush1.msra.mxu0 0.0
    %1121 = vmatprep.subr.mxu0 0.0
    %1122 = vmatpush1.msra.mxu0 0.0
    %1123 = vmatprep.subr.mxu0 0.0
    %1124 = vmatpush1.msra.mxu0 0.0
    %1125 = vmatprep.subr.mxu0 0.0
    %1126 = vmatpush1.msra.mxu0 0.0
    %1127 = vmatprep.subr.mxu0 0.0
    %1128 = vmatpush1.msra.mxu0 0.0
    %1129 = vmatprep.subr.mxu0 0.0
    %1130 = vmatpush1.msra.mxu0 0.0
    %1131 = vmatprep.subr.mxu0 0.0
    %1132 = vmatpush1.msra.mxu0 0.0
    %1133 = vmatprep.subr.mxu0 0.0
    %1134 = vmatpush1.msra.mxu0 0.0
    %1135 = vmatprep.subr.mxu0 0.0
    %1136 = vmatpush1.msra.mxu0 0.0
    %1137 = vmatprep.subr.mxu0 0.0
    %1138 = vmatpush1.msra.mxu0 0.0
    %1139 = vmatprep.subr.mxu0 0.0
    %1140 = vmatpush1.msra.mxu0 0.0
    %1141 = vmatprep.subr.mxu0 0.0
    %1142 = vmatpush1.msra.mxu0 0.0
    %1143 = vmatprep.subr.mxu0 0.0
    %1144 = vmatpush1.msra.mxu0 0.0
    %1145 = vmatprep.subr.mxu0 0.0
    %1146 = vmatpush1.msra.mxu0 0.0
    %1147 = vmatprep.subr.mxu0 0.0
    %1148 = vmatpush1.msra.mxu0 0.0
    %1149 = vmatprep.subr.mxu0 0.0
    %1150 = vmatpush1.msra.mxu0 0.0
    %1151 = vmatprep.mubr.f32.mxu0 0.0
    %1152 = vmatmul.mubr.f32.gmra.mrb[0].mxu0 %v872
    %v1153 = vpop.f32.mrb[0].mxu0
    %v1154 = vadd.f32 %v1083, %v1153
    %v1155 = vpop.f32.mrb[0].mxu0
    %v1156 = vadd.f32 %v1085, %v1155
    %1157 = vdwg.mxu0
    %1158 = vmatprep.subr.mxu0 %v49
    %1159 = vmatpush1.msra.mxu0 %v48
    %1160 = vmatprep.subr.mxu0 %v57
    %1161 = vmatpush1.msra.mxu0 %v56
    %1162 = vmatprep.subr.mxu0 %v65
    %1163 = vmatpush1.msra.mxu0 %v64
    %1164 = vmatprep.subr.mxu0 %v73
    %1165 = vmatpush1.msra.mxu0 %v72
    %1166 = vmatprep.subr.mxu0 %v81
    %1167 = vmatpush1.msra.mxu0 %v80
    %1168 = vmatprep.subr.mxu0 %v89
    %1169 = vmatpush1.msra.mxu0 %v88
    %1170 = vmatprep.subr.mxu0 %v97
    %1171 = vmatpush1.msra.mxu0 %v96
    %1172 = vmatprep.subr.mxu0 %v105
    %1173 = vmatpush1.msra.mxu0 %v104
    %1174 = vmatprep.subr.mxu0 %v113
    %1175 = vmatpush1.msra.mxu0 %v112
    %1176 = vmatprep.subr.mxu0 %v121
    %1177 = vmatpush1.msra.mxu0 %v120
    %1178 = vmatprep.subr.mxu0 %v129
    %1179 = vmatpush1.msra.mxu0 %v128
    %1180 = vmatprep.subr.mxu0 %v137
    %1181 = vmatpush1.msra.mxu0 %v136
    %1182 = vmatprep.subr.mxu0 %v145
    %1183 = vmatpush1.msra.mxu0 %v144
    %1184 = vmatprep.subr.mxu0 %v153
    %1185 = vmatpush1.msra.mxu0 %v152
    %1186 = vmatprep.subr.mxu0 %v161
    %1187 = vmatpush1.msra.mxu0 %v160
    %1188 = vmatprep.subr.mxu0 %v169
    %1189 = vmatpush1.msra.mxu0 %v168
    %1190 = vmatprep.subr.mxu0 %v177
    %1191 = vmatpush1.msra.mxu0 %v176
    %1192 = vmatprep.subr.mxu0 %v185
    %1193 = vmatpush1.msra.mxu0 %v184
    %1194 = vmatprep.subr.mxu0 %v193
    %1195 = vmatpush1.msra.mxu0 %v192
    %1196 = vmatprep.subr.mxu0 %v201
    %1197 = vmatpush1.msra.mxu0 %v200
    %1198 = vmatprep.subr.mxu0 %v209
    %1199 = vmatpush1.msra.mxu0 %v208
    %1200 = vmatprep.subr.mxu0 %v217
    %1201 = vmatpush1.msra.mxu0 %v216
    %1202 = vmatprep.subr.mxu0 %v225
    %1203 = vmatpush1.msra.mxu0 %v224
    %1204 = vmatprep.subr.mxu0 %v233
    %1205 = vmatpush1.msra.mxu0 %v232
    %1206 = vmatprep.subr.mxu0 %v241
    %1207 = vmatpush1.msra.mxu0 %v240
    %1208 = vmatprep.subr.mxu0 %v249
    %1209 = vmatpush1.msra.mxu0 %v248
    %1210 = vmatprep.subr.mxu0 %v257
    %1211 = vmatpush1.msra.mxu0 %v256
    %1212 = vmatprep.subr.mxu0 %v265
    %1213 = vmatpush1.msra.mxu0 %v264
    %1214 = vmatprep.subr.mxu0 %v273
    %1215 = vmatpush1.msra.mxu0 %v272
    %1216 = vmatprep.subr.mxu0 %v281
    %1217 = vmatpush1.msra.mxu0 %v280
    %1218 = vmatprep.subr.mxu0 %v289
    %1219 = vmatpush1.msra.mxu0 %v288
    %1220 = vmatprep.subr.mxu0 %v297
    %1221 = vmatpush1.msra.mxu0 %v296
    %1222 = vmatprep.mubr.f32.mxu0 %v847
    %1223 = vmatmul.mubr.f32.gmra.mrb[0].mxu0 %v839
    %v1224 = vpop.f32.mrb[0].mxu0
    %v1225 = vadd.f32 0.0, %v1224
    %v1226 = vpop.f32.mrb[0].mxu0
    %v1227 = vadd.f32 0.0, %v1226
    %1228 = vdwg.mxu0
    %1229 = vmatprep.subr.mxu0 %v305
    %1230 = vmatpush1.msra.mxu0 %v304
    %1231 = vmatprep.subr.mxu0 %v313
    %1232 = vmatpush1.msra.mxu0 %v312
    %1233 = vmatprep.subr.mxu0 %v321
    %1234 = vmatpush1.msra.mxu0 %v320
    %1235 = vmatprep.subr.mxu0 %v329
    %1236 = vmatpush1.msra.mxu0 %v328
    %1237 = vmatprep.subr.mxu0 %v337
    %1238 = vmatpush1.msra.mxu0 %v336
    %1239 = vmatprep.subr.mxu0 %v345
    %1240 = vmatpush1.msra.mxu0 %v344
    %1241 = vmatprep.subr.mxu0 %v353
    %1242 = vmatpush1.msra.mxu0 %v352
    %1243 = vmatprep.subr.mxu0 %v361
    %1244 = vmatpush1.msra.mxu0 %v360
    %1245 = vmatprep.subr.mxu0 %v369
    %1246 = vmatpush1.msra.mxu0 %v368
    %1247 = vmatprep.subr.mxu0 %v377
    %1248 = vmatpush1.msra.mxu0 %v376
    %1249 = vmatprep.subr.mxu0 %v385
    %1250 = vmatpush1.msra.mxu0 %v384
    %1251 = vmatprep.subr.mxu0 %v393
    %1252 = vmatpush1.msra.mxu0 %v392
    %1253 = vmatprep.subr.mxu0 %v401
    %1254 = vmatpush1.msra.mxu0 %v400
    %1255 = vmatprep.subr.mxu0 %v409
    %1256 = vmatpush1.msra.mxu0 %v408
    %1257 = vmatprep.subr.mxu0 %v417
    %1258 = vmatpush1.msra.mxu0 %v416
    %1259 = vmatprep.subr.mxu0 %v425
    %1260 = vmatpush1.msra.mxu0 %v424
    %1261 = vmatprep.subr.mxu0 %v433
    %1262 = vmatpush1.msra.mxu0 %v432
    %1263 = vmatprep.subr.mxu0 %v441
    %1264 = vmatpush1.msra.mxu0 %v440
    %1265 = vmatprep.subr.mxu0 %v449
    %1266 = vmatpush1.msra.mxu0 %v448
    %1267 = vmatprep.subr.mxu0 %v457
    %1268 = vmatpush1.msra.mxu0 %v456
    %1269 = vmatprep.subr.mxu0 %v465
    %1270 = vmatpush1.msra.mxu0 %v464
    %1271 = vmatprep.subr.mxu0 %v473
    %1272 = vmatpush1.msra.mxu0 %v472
    %1273 = vmatprep.subr.mxu0 %v481
    %1274 = vmatpush1.msra.mxu0 %v480
    %1275 = vmatprep.subr.mxu0 %v489
    %1276 = vmatpush1.msra.mxu0 %v488
    %1277 = vmatprep.subr.mxu0 %v497
    %1278 = vmatpush1.msra.mxu0 %v496
    %1279 = vmatprep.subr.mxu0 %v505
    %1280 = vmatpush1.msra.mxu0 %v504
    %1281 = vmatprep.subr.mxu0 %v513
    %1282 = vmatpush1.msra.mxu0 %v512
    %1283 = vmatprep.subr.mxu0 %v521
    %1284 = vmatpush1.msra.mxu0 %v520
    %1285 = vmatprep.subr.mxu0 %v529
    %1286 = vmatpush1.msra.mxu0 %v528
    %1287 = vmatprep.subr.mxu0 %v537
    %1288 = vmatpush1.msra.mxu0 %v536
    %1289 = vmatprep.subr.mxu0 %v545
    %1290 = vmatpush1.msra.mxu0 %v544
    %1291 = vmatprep.subr.mxu0 %v553
    %1292 = vmatpush1.msra.mxu0 %v552
    %1293 = vmatprep.mubr.f32.mxu0 %v848
    %1294 = vmatmul.mubr.f32.gmra.mrb[0].mxu0 %v846
    %v1295 = vpop.f32.mrb[0].mxu0
    %v1296 = vadd.f32 %v1225, %v1295
    %v1297 = vpop.f32.mrb[0].mxu0
    %v1298 = vadd.f32 %v1227, %v1297
    %1299 = vdwg.mxu0
    %1300 = vmatprep.subr.mxu0 %v561
    %1301 = vmatpush1.msra.mxu0 %v560
    %1302 = vmatprep.subr.mxu0 %v569
    %1303 = vmatpush1.msra.mxu0 %v568
    %1304 = vmatprep.subr.mxu0 %v577
    %1305 = vmatpush1.msra.mxu0 %v576
    %1306 = vmatprep.subr.mxu0 %v585
    %1307 = vmatpush1.msra.mxu0 %v584
    %1308 = vmatprep.subr.mxu0 %v593
    %1309 = vmatpush1.msra.mxu0 %v592
    %1310 = vmatprep.subr.mxu0 %v601
    %1311 = vmatpush1.msra.mxu0 %v600
    %1312 = vmatprep.subr.mxu0 %v609
    %1313 = vmatpush1.msra.mxu0 %v608
    %1314 = vmatprep.subr.mxu0 %v617
    %1315 = vmatpush1.msra.mxu0 %v616
    %1316 = vmatprep.subr.mxu0 %v625
    %1317 = vmatpush1.msra.mxu0 %v624
    %1318 = vmatprep.subr.mxu0 %v633
    %1319 = vmatpush1.msra.mxu0 %v632
    %1320 = vmatprep.subr.mxu0 %v641
    %1321 = vmatpush1.msra.mxu0 %v640
    %1322 = vmatprep.subr.mxu0 %v649
    %1323 = vmatpush1.msra.mxu0 %v648
    %1324 = vmatprep.subr.mxu0 %v657
    %1325 = vmatpush1.msra.mxu0 %v656
    %1326 = vmatprep.subr.mxu0 %v665
    %1327 = vmatpush1.msra.mxu0 %v664
    %1328 = vmatprep.subr.mxu0 %v673
    %1329 = vmatpush1.msra.mxu0 %v672
    %1330 = vmatprep.subr.mxu0 %v681
    %1331 = vmatpush1.msra.mxu0 %v680
    %1332 = vmatprep.subr.mxu0 %v689
    %1333 = vmatpush1.msra.mxu0 %v688
    %1334 = vmatprep.subr.mxu0 %v697
    %1335 = vmatpush1.msra.mxu0 %v696
    %1336 = vmatprep.subr.mxu0 %v705
    %1337 = vmatpush1.msra.mxu0 %v704
    %1338 = vmatprep.subr.mxu0 %v713
    %1339 = vmatpush1.msra.mxu0 %v712
    %1340 = vmatprep.subr.mxu0 %v721
    %1341 = vmatpush1.msra.mxu0 %v720
    %1342 = vmatprep.subr.mxu0 %v729
    %1343 = vmatpush1.msra.mxu0 %v728
    %1344 = vmatprep.subr.mxu0 %v737
    %1345 = vmatpush1.msra.mxu0 %v736
    %1346 = vmatprep.subr.mxu0 %v745
    %1347 = vmatpush1.msra.mxu0 %v744
    %1348 = vmatprep.subr.mxu0 %v753
    %1349 = vmatpush1.msra.mxu0 %v752
    %1350 = vmatprep.subr.mxu0 %v761
    %1351 = vmatpush1.msra.mxu0 %v760
    %1352 = vmatprep.subr.mxu0 %v769
    %1353 = vmatpush1.msra.mxu0 %v768
    %1354 = vmatprep.subr.mxu0 %v777
    %1355 = vmatpush1.msra.mxu0 %v776
    %1356 = vmatprep.subr.mxu0 %v785
    %1357 = vmatpush1.msra.mxu0 %v784
    %1358 = vmatprep.subr.mxu0 %v793
    %1359 = vmatpush1.msra.mxu0 %v792
    %1360 = vmatprep.subr.mxu0 %v801
    %1361 = vmatpush1.msra.mxu0 %v800
    %1362 = vmatprep.subr.mxu0 %v809
    %1363 = vmatpush1.msra.mxu0 %v808
    %1364 = vmatprep.mubr.f32.mxu0 %v864
    %1365 = vmatmul.mubr.f32.gmra.mrb[0].mxu0 %v856
    %v1366 = vpop.f32.mrb[0].mxu0
    %v1367 = vadd.f32 %v1296, %v1366
    %v1368 = vpop.f32.mrb[0].mxu0
    %v1369 = vadd.f32 %v1298, %v1368
    %1370 = vdwg.mxu0
    %1371 = vmatprep.subr.mxu0 %v817
    %1372 = vmatpush1.msra.mxu0 %v816
    %1373 = vmatprep.subr.mxu0 %v825
    %1374 = vmatpush1.msra.mxu0 %v824
    %1375 = vmatprep.subr.mxu0 0.0
    %1376 = vmatpush1.msra.mxu0 0.0
    %1377 = vmatprep.subr.mxu0 0.0
    %1378 = vmatpush1.msra.mxu0 0.0
    %1379 = vmatprep.subr.mxu0 0.0
    %1380 = vmatpush1.msra.mxu0 0.0
    %1381 = vmatprep.subr.mxu0 0.0
    %1382 = vmatpush1.msra.mxu0 0.0
    %1383 = vmatprep.subr.mxu0 0.0
    %1384 = vmatpush1.msra.mxu0 0.0
    %1385 = vmatprep.subr.mxu0 0.0
    %1386 = vmatpush1.msra.mxu0 0.0
    %1387 = vmatprep.subr.mxu0 0.0
    %1388 = vmatpush1.msra.mxu0 0.0
    %1389 = vmatprep.subr.mxu0 0.0
    %1390 = vmatpush1.msra.mxu0 0.0
    %1391 = vmatprep.subr.mxu0 0.0
    %1392 = vmatpush1.msra.mxu0 0.0
    %1393 = vmatprep.subr.mxu0 0.0
    %1394 = vmatpush1.msra.mxu0 0.0
    %1395 = vmatprep.subr.mxu0 0.0
    %1396 = vmatpush1.msra.mxu0 0.0
    %1397 = vmatprep.subr.mxu0 0.0
    %1398 = vmatpush1.msra.mxu0 0.0
    %1399 = vmatprep.subr.mxu0 0.0
    %1400 = vmatpush1.msra.mxu0 0.0
    %1401 = vmatprep.subr.mxu0 0.0
    %1402 = vmatpush1.msra.mxu0 0.0
    %1403 = vmatprep.subr.mxu0 0.0
    %1404 = vmatpush1.msra.mxu0 0.0
    %1405 = vmatprep.subr.mxu0 0.0
    %1406 = vmatpush1.msra.mxu0 0.0
    %1407 = vmatprep.subr.mxu0 0.0
    %1408 = vmatpush1.msra.mxu0 0.0
    %1409 = vmatprep.subr.mxu0 0.0
    %1410 = vmatpush1.msra.mxu0 0.0
    %1411 = vmatprep.subr.mxu0 0.0
    %1412 = vmatpush1.msra.mxu0 0.0
    %1413 = vmatprep.subr.mxu0 0.0
    %1414 = vmatpush1.msra.mxu0 0.0
    %1415 = vmatprep.subr.mxu0 0.0
    %1416 = vmatpush1.msra.mxu0 0.0
    %1417 = vmatprep.subr.mxu0 0.0
    %1418 = vmatpush1.msra.mxu0 0.0
    %1419 = vmatprep.subr.mxu0 0.0
    %1420 = vmatpush1.msra.mxu0 0.0
    %1421 = vmatprep.subr.mxu0 0.0
    %1422 = vmatpush1.msra.mxu0 0.0
    %1423 = vmatprep.subr.mxu0 0.0
    %1424 = vmatpush1.msra.mxu0 0.0
    %1425 = vmatprep.subr.mxu0 0.0
    %1426 = vmatpush1.msra.mxu0 0.0
    %1427 = vmatprep.subr.mxu0 0.0
    %1428 = vmatpush1.msra.mxu0 0.0
    %1429 = vmatprep.subr.mxu0 0.0
    %1430 = vmatpush1.msra.mxu0 0.0
    %1431 = vmatprep.subr.mxu0 0.0
    %1432 = vmatpush1.msra.mxu0 0.0
    %1433 = vmatprep.subr.mxu0 0.0
    %1434 = vmatpush1.msra.mxu0 0.0
    %1435 = vmatprep.mubr.f32.mxu0 0.0
    %1436 = vmatmul.mubr.f32.gmra.mrb[0].mxu0 %v872
    %v1437 = vpop.f32.mrb[0].mxu0
    %v1438 = vadd.f32 %v1367, %v1437
    %v1439 = vpop.f32.mrb[0].mxu0
    %v1440 = vadd.f32 %v1369, %v1439
    %1441 = vdwg.mxu0
    %1442 = vmatprep.subr.mxu0 %v51
    %1443 = vmatpush1.msra.mxu0 %v50
    %1444 = vmatprep.subr.mxu0 %v59
    %1445 = vmatpush1.msra.mxu0 %v58
    %1446 = vmatprep.subr.mxu0 %v67
    %1447 = vmatpush1.msra.mxu0 %v66
    %1448 = vmatprep.subr.mxu0 %v75
    %1449 = vmatpush1.msra.mxu0 %v74
    %1450 = vmatprep.subr.mxu0 %v83
    %1451 = vmatpush1.msra.mxu0 %v82
    %1452 = vmatprep.subr.mxu0 %v91
    %1453 = vmatpush1.msra.mxu0 %v90
    %1454 = vmatprep.subr.mxu0 %v99
    %1455 = vmatpush1.msra.mxu0 %v98
    %1456 = vmatprep.subr.mxu0 %v107
    %1457 = vmatpush1.msra.mxu0 %v106
    %1458 = vmatprep.subr.mxu0 %v115
    %1459 = vmatpush1.msra.mxu0 %v114
    %1460 = vmatprep.subr.mxu0 %v123
    %1461 = vmatpush1.msra.mxu0 %v122
    %1462 = vmatprep.subr.mxu0 %v131
    %1463 = vmatpush1.msra.mxu0 %v130
    %1464 = vmatprep.subr.mxu0 %v139
    %1465 = vmatpush1.msra.mxu0 %v138
    %1466 = vmatprep.subr.mxu0 %v147
    %1467 = vmatpush1.msra.mxu0 %v146
    %1468 = vmatprep.subr.mxu0 %v155
    %1469 = vmatpush1.msra.mxu0 %v154
    %1470 = vmatprep.subr.mxu0 %v163
    %1471 = vmatpush1.msra.mxu0 %v162
    %1472 = vmatprep.subr.mxu0 %v171
    %1473 = vmatpush1.msra.mxu0 %v170
    %1474 = vmatprep.subr.mxu0 %v179
    %1475 = vmatpush1.msra.mxu0 %v178
    %1476 = vmatprep.subr.mxu0 %v187
    %1477 = vmatpush1.msra.mxu0 %v186
    %1478 = vmatprep.subr.mxu0 %v195
    %1479 = vmatpush1.msra.mxu0 %v194
    %1480 = vmatprep.subr.mxu0 %v203
    %1481 = vmatpush1.msra.mxu0 %v202
    %1482 = vmatprep.subr.mxu0 %v211
    %1483 = vmatpush1.msra.mxu0 %v210
    %1484 = vmatprep.subr.mxu0 %v219
    %1485 = vmatpush1.msra.mxu0 %v218
    %1486 = vmatprep.subr.mxu0 %v227
    %1487 = vmatpush1.msra.mxu0 %v226
    %1488 = vmatprep.subr.mxu0 %v235
    %1489 = vmatpush1.msra.mxu0 %v234
    %1490 = vmatprep.subr.mxu0 %v243
    %1491 = vmatpush1.msra.mxu0 %v242
    %1492 = vmatprep.subr.mxu0 %v251
    %1493 = vmatpush1.msra.mxu0 %v250
    %1494 = vmatprep.subr.mxu0 %v259
    %1495 = vmatpush1.msra.mxu0 %v258
    %1496 = vmatprep.subr.mxu0 %v267
    %1497 = vmatpush1.msra.mxu0 %v266
    %1498 = vmatprep.subr.mxu0 %v275
    %1499 = vmatpush1.msra.mxu0 %v274
    %1500 = vmatprep.subr.mxu0 %v283
    %1501 = vmatpush1.msra.mxu0 %v282
    %1502 = vmatprep.subr.mxu0 %v291
    %1503 = vmatpush1.msra.mxu0 %v290
    %1504 = vmatprep.subr.mxu0 %v299
    %1505 = vmatpush1.msra.mxu0 %v298
    %1506 = vmatprep.mubr.f32.mxu0 %v847
    %1507 = vmatmul.mubr.f32.gmra.mrb[0].mxu0 %v839
    %v1508 = vpop.f32.mrb[0].mxu0
    %v1509 = vadd.f32 0.0, %v1508
    %v1510 = vpop.f32.mrb[0].mxu0
    %v1511 = vadd.f32 0.0, %v1510
    %1512 = vdwg.mxu0
    %1513 = vmatprep.subr.mxu0 %v307
    %1514 = vmatpush1.msra.mxu0 %v306
    %1515 = vmatprep.subr.mxu0 %v315
    %1516 = vmatpush1.msra.mxu0 %v314
    %1517 = vmatprep.subr.mxu0 %v323
    %1518 = vmatpush1.msra.mxu0 %v322
    %1519 = vmatprep.subr.mxu0 %v331
    %1520 = vmatpush1.msra.mxu0 %v330
    %1521 = vmatprep.subr.mxu0 %v339
    %1522 = vmatpush1.msra.mxu0 %v338
    %1523 = vmatprep.subr.mxu0 %v347
    %1524 = vmatpush1.msra.mxu0 %v346
    %1525 = vmatprep.subr.mxu0 %v355
    %1526 = vmatpush1.msra.mxu0 %v354
    %1527 = vmatprep.subr.mxu0 %v363
    %1528 = vmatpush1.msra.mxu0 %v362
    %1529 = vmatprep.subr.mxu0 %v371
    %1530 = vmatpush1.msra.mxu0 %v370
    %1531 = vmatprep.subr.mxu0 %v379
    %1532 = vmatpush1.msra.mxu0 %v378
    %1533 = vmatprep.subr.mxu0 %v387
    %1534 = vmatpush1.msra.mxu0 %v386
    %1535 = vmatprep.subr.mxu0 %v395
    %1536 = vmatpush1.msra.mxu0 %v394
    %1537 = vmatprep.subr.mxu0 %v403
    %1538 = vmatpush1.msra.mxu0 %v402
    %1539 = vmatprep.subr.mxu0 %v411
    %1540 = vmatpush1.msra.mxu0 %v410
    %1541 = vmatprep.subr.mxu0 %v419
    %1542 = vmatpush1.msra.mxu0 %v418
    %1543 = vmatprep.subr.mxu0 %v427
    %1544 = vmatpush1.msra.mxu0 %v426
    %1545 = vmatprep.subr.mxu0 %v435
    %1546 = vmatpush1.msra.mxu0 %v434
    %1547 = vmatprep.subr.mxu0 %v443
    %1548 = vmatpush1.msra.mxu0 %v442
    %1549 = vmatprep.subr.mxu0 %v451
    %1550 = vmatpush1.msra.mxu0 %v450
    %1551 = vmatprep.subr.mxu0 %v459
    %1552 = vmatpush1.msra.mxu0 %v458
    %1553 = vmatprep.subr.mxu0 %v467
    %1554 = vmatpush1.msra.mxu0 %v466
    %1555 = vmatprep.subr.mxu0 %v475
    %1556 = vmatpush1.msra.mxu0 %v474
    %1557 = vmatprep.subr.mxu0 %v483
    %1558 = vmatpush1.msra.mxu0 %v482
    %1559 = vmatprep.subr.mxu0 %v491
    %1560 = vmatpush1.msra.mxu0 %v490
    %1561 = vmatprep.subr.mxu0 %v499
    %1562 = vmatpush1.msra.mxu0 %v498
    %1563 = vmatprep.subr.mxu0 %v507
    %1564 = vmatpush1.msra.mxu0 %v506
    %1565 = vmatprep.subr.mxu0 %v515
    %1566 = vmatpush1.msra.mxu0 %v514
    %1567 = vmatprep.subr.mxu0 %v523
    %1568 = vmatpush1.msra.mxu0 %v522
    %1569 = vmatprep.subr.mxu0 %v531
    %1570 = vmatpush1.msra.mxu0 %v530
    %1571 = vmatprep.subr.mxu0 %v539
    %1572 = vmatpush1.msra.mxu0 %v538
    %1573 = vmatprep.subr.mxu0 %v547
    %1574 = vmatpush1.msra.mxu0 %v546
    %1575 = vmatprep.subr.mxu0 %v555
    %1576 = vmatpush1.msra.mxu0 %v554
    %1577 = vmatprep.mubr.f32.mxu0 %v848
    %1578 = vmatmul.mubr.f32.gmra.mrb[0].mxu0 %v846
    %v1579 = vpop.f32.mrb[0].mxu0
    %v1580 = vadd.f32 %v1509, %v1579
    %v1581 = vpop.f32.mrb[0].mxu0
    %v1582 = vadd.f32 %v1511, %v1581
    %1583 = vdwg.mxu0
    %1584 = vmatprep.subr.mxu0 %v563
    %1585 = vmatpush1.msra.mxu0 %v562
    %1586 = vmatprep.subr.mxu0 %v571
    %1587 = vmatpush1.msra.mxu0 %v570
    %1588 = vmatprep.subr.mxu0 %v579
    %1589 = vmatpush1.msra.mxu0 %v578
    %1590 = vmatprep.subr.mxu0 %v587
    %1591 = vmatpush1.msra.mxu0 %v586
    %1592 = vmatprep.subr.mxu0 %v595
    %1593 = vmatpush1.msra.mxu0 %v594
    %1594 = vmatprep.subr.mxu0 %v603
    %1595 = vmatpush1.msra.mxu0 %v602
    %1596 = vmatprep.subr.mxu0 %v611
    %1597 = vmatpush1.msra.mxu0 %v610
    %1598 = vmatprep.subr.mxu0 %v619
    %1599 = vmatpush1.msra.mxu0 %v618
    %1600 = vmatprep.subr.mxu0 %v627
    %1601 = vmatpush1.msra.mxu0 %v626
    %1602 = vmatprep.subr.mxu0 %v635
    %1603 = vmatpush1.msra.mxu0 %v634
    %1604 = vmatprep.subr.mxu0 %v643
    %1605 = vmatpush1.msra.mxu0 %v642
    %1606 = vmatprep.subr.mxu0 %v651
    %1607 = vmatpush1.msra.mxu0 %v650
    %1608 = vmatprep.subr.mxu0 %v659
    %1609 = vmatpush1.msra.mxu0 %v658
    %1610 = vmatprep.subr.mxu0 %v667
    %1611 = vmatpush1.msra.mxu0 %v666
    %1612 = vmatprep.subr.mxu0 %v675
    %1613 = vmatpush1.msra.mxu0 %v674
    %1614 = vmatprep.subr.mxu0 %v683
    %1615 = vmatpush1.msra.mxu0 %v682
    %1616 = vmatprep.subr.mxu0 %v691
    %1617 = vmatpush1.msra.mxu0 %v690
    %1618 = vmatprep.subr.mxu0 %v699
    %1619 = vmatpush1.msra.mxu0 %v698
    %1620 = vmatprep.subr.mxu0 %v707
    %1621 = vmatpush1.msra.mxu0 %v706
    %1622 = vmatprep.subr.mxu0 %v715
    %1623 = vmatpush1.msra.mxu0 %v714
    %1624 = vmatprep.subr.mxu0 %v723
    %1625 = vmatpush1.msra.mxu0 %v722
    %1626 = vmatprep.subr.mxu0 %v731
    %1627 = vmatpush1.msra.mxu0 %v730
    %1628 = vmatprep.subr.mxu0 %v739
    %1629 = vmatpush1.msra.mxu0 %v738
    %1630 = vmatprep.subr.mxu0 %v747
    %1631 = vmatpush1.msra.mxu0 %v746
    %1632 = vmatprep.subr.mxu0 %v755
    %1633 = vmatpush1.msra.mxu0 %v754
    %1634 = vmatprep.subr.mxu0 %v763
    %1635 = vmatpush1.msra.mxu0 %v762
    %1636 = vmatprep.subr.mxu0 %v771
    %1637 = vmatpush1.msra.mxu0 %v770
    %1638 = vmatprep.subr.mxu0 %v779
    %1639 = vmatpush1.msra.mxu0 %v778
    %1640 = vmatprep.subr.mxu0 %v787
    %1641 = vmatpush1.msra.mxu0 %v786
    %1642 = vmatprep.subr.mxu0 %v795
    %1643 = vmatpush1.msra.mxu0 %v794
    %1644 = vmatprep.subr.mxu0 %v803
    %1645 = vmatpush1.msra.mxu0 %v802
    %1646 = vmatprep.subr.mxu0 %v811
    %1647 = vmatpush1.msra.mxu0 %v810
    %1648 = vmatprep.mubr.f32.mxu0 %v864
    %1649 = vmatmul.mubr.f32.gmra.mrb[0].mxu0 %v856
    %v1650 = vpop.f32.mrb[0].mxu0
    %v1651 = vadd.f32 %v1580, %v1650
    %v1652 = vpop.f32.mrb[0].mxu0
    %v1653 = vadd.f32 %v1582, %v1652
    %1654 = vdwg.mxu0
    %1655 = vmatprep.subr.mxu0 %v819
    %1656 = vmatpush1.msra.mxu0 %v818
    %1657 = vmatprep.subr.mxu0 %v827
    %1658 = vmatpush1.msra.mxu0 %v826
    %1659 = vmatprep.subr.mxu0 0.0
    %1660 = vmatpush1.msra.mxu0 0.0
    %1661 = vmatprep.subr.mxu0 0.0
    %1662 = vmatpush1.msra.mxu0 0.0
    %1663 = vmatprep.subr.mxu0 0.0
    %1664 = vmatpush1.msra.mxu0 0.0
    %1665 = vmatprep.subr.mxu0 0.0
    %1666 = vmatpush1.msra.mxu0 0.0
    %1667 = vmatprep.subr.mxu0 0.0
    %1668 = vmatpush1.msra.mxu0 0.0
    %1669 = vmatprep.subr.mxu0 0.0
    %1670 = vmatpush1.msra.mxu0 0.0
    %1671 = vmatprep.subr.mxu0 0.0
    %1672 = vmatpush1.msra.mxu0 0.0
    %1673 = vmatprep.subr.mxu0 0.0
    %1674 = vmatpush1.msra.mxu0 0.0
    %1675 = vmatprep.subr.mxu0 0.0
    %1676 = vmatpush1.msra.mxu0 0.0
    %1677 = vmatprep.subr.mxu0 0.0
    %1678 = vmatpush1.msra.mxu0 0.0
    %1679 = vmatprep.subr.mxu0 0.0
    %1680 = vmatpush1.msra.mxu0 0.0
    %1681 = vmatprep.subr.mxu0 0.0
    %1682 = vmatpush1.msra.mxu0 0.0
    %1683 = vmatprep.subr.mxu0 0.0
    %1684 = vmatpush1.msra.mxu0 0.0
    %1685 = vmatprep.subr.mxu0 0.0
    %1686 = vmatpush1.msra.mxu0 0.0
    %1687 = vmatprep.subr.mxu0 0.0
    %1688 = vmatpush1.msra.mxu0 0.0
    %1689 = vmatprep.subr.mxu0 0.0
    %1690 = vmatpush1.msra.mxu0 0.0
    %1691 = vmatprep.subr.mxu0 0.0
    %1692 = vmatpush1.msra.mxu0 0.0
    %1693 = vmatprep.subr.mxu0 0.0
    %1694 = vmatpush1.msra.mxu0 0.0
    %1695 = vmatprep.subr.mxu0 0.0
    %1696 = vmatpush1.msra.mxu0 0.0
    %1697 = vmatprep.subr.mxu0 0.0
    %1698 = vmatpush1.msra.mxu0 0.0
    %1699 = vmatprep.subr.mxu0 0.0
    %1700 = vmatpush1.msra.mxu0 0.0
    %1701 = vmatprep.subr.mxu0 0.0
    %1702 = vmatpush1.msra.mxu0 0.0
    %1703 = vmatprep.subr.mxu0 0.0
    %1704 = vmatpush1.msra.mxu0 0.0
    %1705 = vmatprep.subr.mxu0 0.0
    %1706 = vmatpush1.msra.mxu0 0.0
    %1707 = vmatprep.subr.mxu0 0.0
    %1708 = vmatpush1.msra.mxu0 0.0
    %1709 = vmatprep.subr.mxu0 0.0
    %1710 = vmatpush1.msra.mxu0 0.0
    %1711 = vmatprep.subr.mxu0 0.0
    %1712 = vmatpush1.msra.mxu0 0.0
    %1713 = vmatprep.subr.mxu0 0.0
    %1714 = vmatpush1.msra.mxu0 0.0
    %1715 = vmatprep.subr.mxu0 0.0
    %1716 = vmatpush1.msra.mxu0 0.0
    %1717 = vmatprep.subr.mxu0 0.0
    %1718 = vmatpush1.msra.mxu0 0.0
    %1719 = vmatprep.mubr.f32.mxu0 0.0
    %1720 = vmatmul.mubr.f32.gmra.mrb[0].mxu0 %v872
    %v1721 = vpop.f32.mrb[0].mxu0
    %v1722 = vadd.f32 %v1651, %v1721
    %v1723 = vpop.f32.mrb[0].mxu0
    %v1724 = vadd.f32 %v1653, %v1723
    %1725 = vdwg.mxu0
    %1726 = vmatprep.subr.mxu0 %v53
    %1727 = vmatpush1.msra.mxu0 %v52
    %1728 = vmatprep.subr.mxu0 %v61
    %1729 = vmatpush1.msra.mxu0 %v60
    %1730 = vmatprep.subr.mxu0 %v69
    %1731 = vmatpush1.msra.mxu0 %v68
    %1732 = vmatprep.subr.mxu0 %v77
    %1733 = vmatpush1.msra.mxu0 %v76
    %1734 = vmatprep.subr.mxu0 %v85
    %1735 = vmatpush1.msra.mxu0 %v84
    %1736 = vmatprep.subr.mxu0 %v93
    %1737 = vmatpush1.msra.mxu0 %v92
    %1738 = vmatprep.subr.mxu0 %v101
    %1739 = vmatpush1.msra.mxu0 %v100
    %1740 = vmatprep.subr.mxu0 %v109
    %1741 = vmatpush1.msra.mxu0 %v108
    %1742 = vmatprep.subr.mxu0 %v117
    %1743 = vmatpush1.msra.mxu0 %v116
    %1744 = vmatprep.subr.mxu0 %v125
    %1745 = vmatpush1.msra.mxu0 %v124
    %1746 = vmatprep.subr.mxu0 %v133
    %1747 = vmatpush1.msra.mxu0 %v132
    %1748 = vmatprep.subr.mxu0 %v141
    %1749 = vmatpush1.msra.mxu0 %v140
    %1750 = vmatprep.subr.mxu0 %v149
    %1751 = vmatpush1.msra.mxu0 %v148
    %1752 = vmatprep.subr.mxu0 %v157
    %1753 = vmatpush1.msra.mxu0 %v156
    %1754 = vmatprep.subr.mxu0 %v165
    %1755 = vmatpush1.msra.mxu0 %v164
    %1756 = vmatprep.subr.mxu0 %v173
    %1757 = vmatpush1.msra.mxu0 %v172
    %1758 = vmatprep.subr.mxu0 %v181
    %1759 = vmatpush1.msra.mxu0 %v180
    %1760 = vmatprep.subr.mxu0 %v189
    %1761 = vmatpush1.msra.mxu0 %v188
    %1762 = vmatprep.subr.mxu0 %v197
    %1763 = vmatpush1.msra.mxu0 %v196
    %1764 = vmatprep.subr.mxu0 %v205
    %1765 = vmatpush1.msra.mxu0 %v204
    %1766 = vmatprep.subr.mxu0 %v213
    %1767 = vmatpush1.msra.mxu0 %v212
    %1768 = vmatprep.subr.mxu0 %v221
    %1769 = vmatpush1.msra.mxu0 %v220
    %1770 = vmatprep.subr.mxu0 %v229
    %1771 = vmatpush1.msra.mxu0 %v228
    %1772 = vmatprep.subr.mxu0 %v237
    %1773 = vmatpush1.msra.mxu0 %v236
    %1774 = vmatprep.subr.mxu0 %v245
    %1775 = vmatpush1.msra.mxu0 %v244
    %1776 = vmatprep.subr.mxu0 %v253
    %1777 = vmatpush1.msra.mxu0 %v252
    %1778 = vmatprep.subr.mxu0 %v261
    %1779 = vmatpush1.msra.mxu0 %v260
    %1780 = vmatprep.subr.mxu0 %v269
    %1781 = vmatpush1.msra.mxu0 %v268
    %1782 = vmatprep.subr.mxu0 %v277
    %1783 = vmatpush1.msra.mxu0 %v276
    %1784 = vmatprep.subr.mxu0 %v285
    %1785 = vmatpush1.msra.mxu0 %v284
    %1786 = vmatprep.subr.mxu0 %v293
    %1787 = vmatpush1.msra.mxu0 %v292
    %1788 = vmatprep.subr.mxu0 %v301
    %1789 = vmatpush1.msra.mxu0 %v300
    %1790 = vmatprep.mubr.f32.mxu0 %v847
    %1791 = vmatmul.mubr.f32.gmra.mrb[0].mxu0 %v839
    %v1792 = vpop.f32.mrb[0].mxu0
    %v1793 = vadd.f32 0.0, %v1792
    %v1794 = vpop.f32.mrb[0].mxu0
    %v1795 = vadd.f32 0.0, %v1794
    %1796 = vdwg.mxu0
    %1797 = vmatprep.subr.mxu0 %v309
    %1798 = vmatpush1.msra.mxu0 %v308
    %1799 = vmatprep.subr.mxu0 %v317
    %1800 = vmatpush1.msra.mxu0 %v316
    %1801 = vmatprep.subr.mxu0 %v325
    %1802 = vmatpush1.msra.mxu0 %v324
    %1803 = vmatprep.subr.mxu0 %v333
    %1804 = vmatpush1.msra.mxu0 %v332
    %1805 = vmatprep.subr.mxu0 %v341
    %1806 = vmatpush1.msra.mxu0 %v340
    %1807 = vmatprep.subr.mxu0 %v349
    %1808 = vmatpush1.msra.mxu0 %v348
    %1809 = vmatprep.subr.mxu0 %v357
    %1810 = vmatpush1.msra.mxu0 %v356
    %1811 = vmatprep.subr.mxu0 %v365
    %1812 = vmatpush1.msra.mxu0 %v364
    %1813 = vmatprep.subr.mxu0 %v373
    %1814 = vmatpush1.msra.mxu0 %v372
    %1815 = vmatprep.subr.mxu0 %v381
    %1816 = vmatpush1.msra.mxu0 %v380
    %1817 = vmatprep.subr.mxu0 %v389
    %1818 = vmatpush1.msra.mxu0 %v388
    %1819 = vmatprep.subr.mxu0 %v397
    %1820 = vmatpush1.msra.mxu0 %v396
    %1821 = vmatprep.subr.mxu0 %v405
    %1822 = vmatpush1.msra.mxu0 %v404
    %1823 = vmatprep.subr.mxu0 %v413
    %1824 = vmatpush1.msra.mxu0 %v412
    %1825 = vmatprep.subr.mxu0 %v421
    %1826 = vmatpush1.msra.mxu0 %v420
    %1827 = vmatprep.subr.mxu0 %v429
    %1828 = vmatpush1.msra.mxu0 %v428
    %1829 = vmatprep.subr.mxu0 %v437
    %1830 = vmatpush1.msra.mxu0 %v436
    %1831 = vmatprep.subr.mxu0 %v445
    %1832 = vmatpush1.msra.mxu0 %v444
    %1833 = vmatprep.subr.mxu0 %v453
    %1834 = vmatpush1.msra.mxu0 %v452
    %1835 = vmatprep.subr.mxu0 %v461
    %1836 = vmatpush1.msra.mxu0 %v460
    %1837 = vmatprep.subr.mxu0 %v469
    %1838 = vmatpush1.msra.mxu0 %v468
    %1839 = vmatprep.subr.mxu0 %v477
    %1840 = vmatpush1.msra.mxu0 %v476
    %1841 = vmatprep.subr.mxu0 %v485
    %1842 = vmatpush1.msra.mxu0 %v484
    %1843 = vmatprep.subr.mxu0 %v493
    %1844 = vmatpush1.msra.mxu0 %v492
    %1845 = vmatprep.subr.mxu0 %v501
    %1846 = vmatpush1.msra.mxu0 %v500
    %1847 = vmatprep.subr.mxu0 %v509
    %1848 = vmatpush1.msra.mxu0 %v508
    %1849 = vmatprep.subr.mxu0 %v517
    %1850 = vmatpush1.msra.mxu0 %v516
    %1851 = vmatprep.subr.mxu0 %v525
    %1852 = vmatpush1.msra.mxu0 %v524
    %1853 = vmatprep.subr.mxu0 %v533
    %1854 = vmatpush1.msra.mxu0 %v532
    %1855 = vmatprep.subr.mxu0 %v541
    %1856 = vmatpush1.msra.mxu0 %v540
    %1857 = vmatprep.subr.mxu0 %v549
    %1858 = vmatpush1.msra.mxu0 %v548
    %1859 = vmatprep.subr.mxu0 %v557
    %1860 = vmatpush1.msra.mxu0 %v556
    %1861 = vmatprep.mubr.f32.mxu0 %v848
    %1862 = vmatmul.mubr.f32.gmra.mrb[0].mxu0 %v846
    %v1863 = vpop.f32.mrb[0].mxu0
    %v1864 = vadd.f32 %v1793, %v1863
    %v1865 = vpop.f32.mrb[0].mxu0
    %v1866 = vadd.f32 %v1795, %v1865
    %1867 = vdwg.mxu0
    %1868 = vmatprep.subr.mxu0 %v565
    %1869 = vmatpush1.msra.mxu0 %v564
    %1870 = vmatprep.subr.mxu0 %v573
    %1871 = vmatpush1.msra.mxu0 %v572
    %1872 = vmatprep.subr.mxu0 %v581
    %1873 = vmatpush1.msra.mxu0 %v580
    %1874 = vmatprep.subr.mxu0 %v589
    %1875 = vmatpush1.msra.mxu0 %v588
    %1876 = vmatprep.subr.mxu0 %v597
    %1877 = vmatpush1.msra.mxu0 %v596
    %1878 = vmatprep.subr.mxu0 %v605
    %1879 = vmatpush1.msra.mxu0 %v604
    %1880 = vmatprep.subr.mxu0 %v613
    %1881 = vmatpush1.msra.mxu0 %v612
    %1882 = vmatprep.subr.mxu0 %v621
    %1883 = vmatpush1.msra.mxu0 %v620
    %1884 = vmatprep.subr.mxu0 %v629
    %1885 = vmatpush1.msra.mxu0 %v628
    %1886 = vmatprep.subr.mxu0 %v637
    %1887 = vmatpush1.msra.mxu0 %v636
    %1888 = vmatprep.subr.mxu0 %v645
    %1889 = vmatpush1.msra.mxu0 %v644
    %1890 = vmatprep.subr.mxu0 %v653
    %1891 = vmatpush1.msra.mxu0 %v652
    %1892 = vmatprep.subr.mxu0 %v661
    %1893 = vmatpush1.msra.mxu0 %v660
    %1894 = vmatprep.subr.mxu0 %v669
    %1895 = vmatpush1.msra.mxu0 %v668
    %1896 = vmatprep.subr.mxu0 %v677
    %1897 = vmatpush1.msra.mxu0 %v676
    %1898 = vmatprep.subr.mxu0 %v685
    %1899 = vmatpush1.msra.mxu0 %v684
    %1900 = vmatprep.subr.mxu0 %v693
    %1901 = vmatpush1.msra.mxu0 %v692
    %1902 = vmatprep.subr.mxu0 %v701
    %1903 = vmatpush1.msra.mxu0 %v700
    %1904 = vmatprep.subr.mxu0 %v709
    %1905 = vmatpush1.msra.mxu0 %v708
    %1906 = vmatprep.subr.mxu0 %v717
    %1907 = vmatpush1.msra.mxu0 %v716
    %1908 = vmatprep.subr.mxu0 %v725
    %1909 = vmatpush1.msra.mxu0 %v724
    %1910 = vmatprep.subr.mxu0 %v733
    %1911 = vmatpush1.msra.mxu0 %v732
    %1912 = vmatprep.subr.mxu0 %v741
    %1913 = vmatpush1.msra.mxu0 %v740
    %1914 = vmatprep.subr.mxu0 %v749
    %1915 = vmatpush1.msra.mxu0 %v748
    %1916 = vmatprep.subr.mxu0 %v757
    %1917 = vmatpush1.msra.mxu0 %v756
    %1918 = vmatprep.subr.mxu0 %v765
    %1919 = vmatpush1.msra.mxu0 %v764
    %1920 = vmatprep.subr.mxu0 %v773
    %1921 = vmatpush1.msra.mxu0 %v772
    %1922 = vmatprep.subr.mxu0 %v781
    %1923 = vmatpush1.msra.mxu0 %v780
    %1924 = vmatprep.subr.mxu0 %v789
    %1925 = vmatpush1.msra.mxu0 %v788
    %1926 = vmatprep.subr.mxu0 %v797
    %1927 = vmatpush1.msra.mxu0 %v796
    %1928 = vmatprep.subr.mxu0 %v805
    %1929 = vmatpush1.msra.mxu0 %v804
    %1930 = vmatprep.subr.mxu0 %v813
    %1931 = vmatpush1.msra.mxu0 %v812
    %1932 = vmatprep.mubr.f32.mxu0 %v864
    %1933 = vmatmul.mubr.f32.gmra.mrb[0].mxu0 %v856
    %v1934 = vpop.f32.mrb[0].mxu0
    %v1935 = vadd.f32 %v1864, %v1934
    %v1936 = vpop.f32.mrb[0].mxu0
    %v1937 = vadd.f32 %v1866, %v1936
    %1938 = vdwg.mxu0
    %1939 = vmatprep.subr.mxu0 %v821
    %1940 = vmatpush1.msra.mxu0 %v820
    %1941 = vmatprep.subr.mxu0 %v829
    %1942 = vmatpush1.msra.mxu0 %v828
    %1943 = vmatprep.subr.mxu0 0.0
    %1944 = vmatpush1.msra.mxu0 0.0
    %1945 = vmatprep.subr.mxu0 0.0
    %1946 = vmatpush1.msra.mxu0 0.0
    %1947 = vmatprep.subr.mxu0 0.0
    %1948 = vmatpush1.msra.mxu0 0.0
    %1949 = vmatprep.subr.mxu0 0.0
    %1950 = vmatpush1.msra.mxu0 0.0
    %1951 = vmatprep.subr.mxu0 0.0
    %1952 = vmatpush1.msra.mxu0 0.0
    %1953 = vmatprep.subr.mxu0 0.0
    %1954 = vmatpush1.msra.mxu0 0.0
    %1955 = vmatprep.subr.mxu0 0.0
    %1956 = vmatpush1.msra.mxu0 0.0
    %1957 = vmatprep.subr.mxu0 0.0
    %1958 = vmatpush1.msra.mxu0 0.0
    %1959 = vmatprep.subr.mxu0 0.0
    %1960 = vmatpush1.msra.mxu0 0.0
    %1961 = vmatprep.subr.mxu0 0.0
    %1962 = vmatpush1.msra.mxu0 0.0
    %1963 = vmatprep.subr.mxu0 0.0
    %1964 = vmatpush1.msra.mxu0 0.0
    %1965 = vmatprep.subr.mxu0 0.0
    %1966 = vmatpush1.msra.mxu0 0.0
    %1967 = vmatprep.subr.mxu0 0.0
    %1968 = vmatpush1.msra.mxu0 0.0
    %1969 = vmatprep.subr.mxu0 0.0
    %1970 = vmatpush1.msra.mxu0 0.0
    %1971 = vmatprep.subr.mxu0 0.0
    %1972 = vmatpush1.msra.mxu0 0.0
    %1973 = vmatprep.subr.mxu0 0.0
    %1974 = vmatpush1.msra.mxu0 0.0
    %1975 = vmatprep.subr.mxu0 0.0
    %1976 = vmatpush1.msra.mxu0 0.0
    %1977 = vmatprep.subr.mxu0 0.0
    %1978 = vmatpush1.msra.mxu0 0.0
    %1979 = vmatprep.subr.mxu0 0.0
    %1980 = vmatpush1.msra.mxu0 0.0
    %1981 = vmatprep.subr.mxu0 0.0
    %1982 = vmatpush1.msra.mxu0 0.0
    %1983 = vmatprep.subr.mxu0 0.0
    %1984 = vmatpush1.msra.mxu0 0.0
    %1985 = vmatprep.subr.mxu0 0.0
    %1986 = vmatpush1.msra.mxu0 0.0
    %1987 = vmatprep.subr.mxu0 0.0
    %1988 = vmatpush1.msra.mxu0 0.0
    %1989 = vmatprep.subr.mxu0 0.0
    %1990 = vmatpush1.msra.mxu0 0.0
    %1991 = vmatprep.subr.mxu0 0.0
    %1992 = vmatpush1.msra.mxu0 0.0
    %1993 = vmatprep.subr.mxu0 0.0
    %1994 = vmatpush1.msra.mxu0 0.0
    %1995 = vmatprep.subr.mxu0 0.0
    %1996 = vmatpush1.msra.mxu0 0.0
    %1997 = vmatprep.subr.mxu0 0.0
    %1998 = vmatpush1.msra.mxu0 0.0
    %1999 = vmatprep.subr.mxu0 0.0
    %2000 = vmatpush1.msra.mxu0 0.0
    %2001 = vmatprep.subr.mxu0 0.0
    %2002 = vmatpush1.msra.mxu0 0.0
    %2003 = vmatprep.mubr.f32.mxu0 0.0
    %2004 = vmatmul.mubr.f32.gmra.mrb[0].mxu0 %v872
    %v2005 = vpop.f32.mrb[0].mxu0
    %v2006 = vadd.f32 %v1935, %v2005
    %v2007 = vpop.f32.mrb[0].mxu0
    %v2008 = vadd.f32 %v1937, %v2007
    %2009 = vdwg.mxu0
    %v2010 = vmax.f32 %v1154, %v1438
    %v2011 = vmax.f32 %v1156, %v1440
    %v2012 = vmax.f32 %v1722, %v2006
    %v2013 = vmax.f32 %v1724, %v2008
    %v2014 = vmax.f32 %v2010, %v2012
    %v2015 = vmax.f32 %v2011, %v2013
    %v2016 = vld [vmem:[#allocation5] sm:$0x3]
    %v2018 = vlaneseq
    %v2019 = vshrl.u32 %v2018, 7
    %v2020 = vsub.s32 0, %v2019
    %v2021 = vrot.slane %v2016, %v2020
    %v2022 = vlaneseq
    %v2023 = vshrl.u32 %v2022, 7
    %v2024 = vsub.s32 1, %v2023
    %v2025 = vrot.slane %v2016, %v2024
    %v2028 = vadd.f32 %v2014, %v2021
    %v2029 = vadd.f32 %v2015, %v2025
    %v2030 = vmax.f32 %v2028, 0.0
    %v2031 = vmax.f32 %v2029, 0.0
    %v2032 = vld [vmem:[%s3] sm:$0xff]
    %v2033 = vld [vmem:[%s3 + $0x8] sm:$0xff]
    %v2034 = vld [vmem:[%s3 + $0x10] sm:$0xff]
    %v2035 = vld [vmem:[%s3 + $0x18] sm:$0xff]
    %v2036 = vld [vmem:[%s3 + $0x20] sm:$0xff]
    %v2037 = vld [vmem:[%s3 + $0x28] sm:$0xff]
    %v2038 = vld [vmem:[%s3 + $0x30] sm:$0xff]
    %v2039 = vld [vmem:[%s3 + $0x38] sm:$0xff]
    %v2040 = vld [vmem:[%s3 + $0x40] sm:$0xff]
    %v2041 = vld [vmem:[%s3 + $0x48] sm:$0xff]
    %v2042 = vld [vmem:[%s3 + $0x50] sm:$0xff]
    %v2043 = vld [vmem:[%s3 + $0x58] sm:$0xff]
    %v2044 = vld [vmem:[%s3 + $0x60] sm:$0xff]
    %v2045 = vld [vmem:[%s3 + $0x68] sm:$0xff]
    %v2046 = vld [vmem:[%s3 + $0x70] sm:$0xff]
    %v2047 = vld [vmem:[%s3 + $0x78] sm:$0xff]
    %v2048 = vld [vmem:[%s3 + $0x80] sm:$0xff]
    %v2049 = vld [vmem:[%s3 + $0x88] sm:$0xff]
    %v2050 = vld [vmem:[%s3 + $0x90] sm:$0xff]
    %v2051 = vld [vmem:[%s3 + $0x98] sm:$0xff]
    %v2052 = vld [vmem:[%s3 + $0xa0] sm:$0xff]
    %v2053 = vld [vmem:[%s3 + $0xa8] sm:$0xff]
    %v2054 = vld [vmem:[%s3 + $0xb0] sm:$0xff]
    %v2055 = vld [vmem:[%s3 + $0xb8] sm:$0xff]
    %v2056 = vld [vmem:[%s3 + $0xc0] sm:$0xff]
    %v2057 = vld [vmem:[%s3 + $0xc8] sm:$0xff]
    %v2058 = vld [vmem:[%s3 + $0xd0] sm:$0xff]
    %v2059 = vld [vmem:[%s3 + $0xd8] sm:$0xff]
    %v2060 = vld [vmem:[%s3 + $0xe0] sm:$0xff]
    %v2061 = vld [vmem:[%s3 + $0xe8] sm:$0xff]
    %v2062 = vld [vmem:[%s3 + $0xf0] sm:$0xff]
    %v2063 = vld [vmem:[%s3 + $0xf8] sm:$0xff]
    %2064 = vmatprep.subr.mxu0 0.0
    %2065 = vmatpush1.msra.mxu0 %v2032
    %2066 = vmatprep.subr.mxu0 0.0
    %2067 = vmatpush1.msra.mxu0 %v2033
    %2068 = vmatprep.subr.mxu0 0.0
    %2069 = vmatpush1.msra.mxu0 %v2034
    %2070 = vmatprep.subr.mxu0 0.0
    %2071 = vmatpush1.msra.mxu0 %v2035
    %2072 = vmatprep.subr.mxu0 0.0
    %2073 = vmatpush1.msra.mxu0 %v2036
    %2074 = vmatprep.subr.mxu0 0.0
    %2075 = vmatpush1.msra.mxu0 %v2037
    %2076 = vmatprep.subr.mxu0 0.0
    %2077 = vmatpush1.msra.mxu0 %v2038
    %2078 = vmatprep.subr.mxu0 0.0
    %2079 = vmatpush1.msra.mxu0 %v2039
    %2080 = vmatprep.subr.mxu0 0.0
    %2081 = vmatpush1.msra.mxu0 %v2040
    %2082 = vmatprep.subr.mxu0 0.0
    %2083 = vmatpush1.msra.mxu0 %v2041
    %2084 = vmatprep.subr.mxu0 0.0
    %2085 = vmatpush1.msra.mxu0 %v2042
    %2086 = vmatprep.subr.mxu0 0.0
    %2087 = vmatpush1.msra.mxu0 %v2043
    %2088 = vmatprep.subr.mxu0 0.0
    %2089 = vmatpush1.msra.mxu0 %v2044
    %2090 = vmatprep.subr.mxu0 0.0
    %2091 = vmatpush1.msra.mxu0 %v2045
    %2092 = vmatprep.subr.mxu0 0.0
    %2093 = vmatpush1.msra.mxu0 %v2046
    %2094 = vmatprep.subr.mxu0 0.0
    %2095 = vmatpush1.msra.mxu0 %v2047
    %2096 = vmatprep.subr.mxu0 0.0
    %2097 = vmatpush1.msra.mxu0 %v2048
    %2098 = vmatprep.subr.mxu0 0.0
    %2099 = vmatpush1.msra.mxu0 %v2049
    %2100 = vmatprep.subr.mxu0 0.0
    %2101 = vmatpush1.msra.mxu0 %v2050
    %2102 = vmatprep.subr.mxu0 0.0
    %2103 = vmatpush1.msra.mxu0 %v2051
    %2104 = vmatprep.subr.mxu0 0.0
    %2105 = vmatpush1.msra.mxu0 %v2052
    %2106 = vmatprep.subr.mxu0 0.0
    %2107 = vmatpush1.msra.mxu0 %v2053
    %2108 = vmatprep.subr.mxu0 0.0
    %2109 = vmatpush1.msra.mxu0 %v2054
    %2110 = vmatprep.subr.mxu0 0.0
    %2111 = vmatpush1.msra.mxu0 %v2055
    %2112 = vmatprep.subr.mxu0 0.0
    %2113 = vmatpush1.msra.mxu0 %v2056
    %2114 = vmatprep.subr.mxu0 0.0
    %2115 = vmatpush1.msra.mxu0 %v2057
    %2116 = vmatprep.subr.mxu0 0.0
    %2117 = vmatpush1.msra.mxu0 %v2058
    %2118 = vmatprep.subr.mxu0 0.0
    %2119 = vmatpush1.msra.mxu0 %v2059
    %2120 = vmatprep.subr.mxu0 0.0
    %2121 = vmatpush1.msra.mxu0 %v2060
    %2122 = vmatprep.subr.mxu0 0.0
    %2123 = vmatpush1.msra.mxu0 %v2061
    %2124 = vmatprep.subr.mxu0 0.0
    %2125 = vmatpush1.msra.mxu0 %v2062
    %2126 = vmatprep.subr.mxu0 0.0
    %2127 = vmatpush1.msra.mxu0 %v2063
    %2128 = vmatprep.mubr.f32.mxu0 %v2031
    %2129 = vmatmul.mubr.f32.gmra.mrb[0].mxu0 %v2030
    %v2130 = vpop.f32.mrb[0].mxu0
    %v2131 = vadd.f32 0.0, %v2130
    %v2132 = vpop.f32.mrb[0].mxu0
    %2133 = vdwg.mxu0
    %vm2134 = vcmask 58368
    %2135 = vst.msk [vmem:[#allocation7] sm:$0x3] %vm2134, %v2131
    // Predicated region
    $region26: #{cnn_encoder_forward.1} parent=1 // pred_check
      _
    $region27: #{cnn_encoder_forward.1} parent=1 // pred_check_branch
      %2137 = sbr.rel (0) target = $region29
    $region28: #{cnn_encoder_forward.1} parent=1 // pred_region
      %s2139 = ssub.s32 32, 32
      %2140 = vsyncadd [#allocation4], %s2139
      %s2142 = sshll.u32 [#allocation7], 4
      %s2143 = int_to_ptr.vmem [resolvable:$true] %s2142
      %2145 = dma.vmem_to_hbm [thread:$0]  %s2143, 32, %s4, [#allocation4]
    $region29: #{cnn_encoder_forward.1} parent=1 // pred_fallthru
      _
    // Predicated region
    $region30: #{cnn_encoder_forward.1} parent=1 // pred_check
      _
    $region31: #{cnn_encoder_forward.1} parent=1 // pred_check_branch
      %2147 = sbr.rel (0) target = $region33
    $region32: #{cnn_encoder_forward.1} parent=1 // pred_region
      %2148 = dma.done [#allocation4], 32
    $region33: #{cnn_encoder_forward.1} parent=1 // pred_fallthru
      _
    %2149 = vsyncpa [#allocation3], 1
    %2150 = vsyncpa [#allocation6], 1
    %2151 = vsyncpa [#allocation4], 1

</llo_original>
